<compile_context>
chip_gen: v7x
topology: tpu7x:2x2x1
jax: 0.10.0
libtpu: 0.0.40
codegen_flags: <defaults>
</compile_context>

<pallas_src>
import functools

import jax
import jax.numpy as jnp
import numpy as np
from jax.experimental import pallas as pl
from jax.experimental.pallas import tpu as pltpu


def _texture_kernel(cm_ref, table_ref, tex_ref, out_ref, *,
                    tile_p, k_chunk, feat, level_chunks, weight_dtype, dot_dtype):
    """cm_ref:    (1, 3, TP)    rows = [gx, gy, mask] for this pixel tile (lane-dense)
       table_ref: (HW_pad, 2)   cols = [hidx, widx] per texel (chunk-aligned per level)
       tex_ref:   (C, HW_pad)   concatenated pyramid texture (channels on sublanes)
       out_ref:   (1, C, TP)    lane-dense output tile
       level_chunks: static tuple of (Hl, Wl, n_chunks) per pyramid level.
    """
    cm = cm_ref[0]                       # (3, TP)
    gx = cm[0:1, :]                      # (1, TP)  width coord in [0,1]
    gy = cm[1:2, :]                      # (1, TP)  height coord in [0,1]
    msk = cm[2:3, :]                     # (1, TP)

    acc = jnp.zeros((feat, tile_p), dtype=jnp.float32)

    chunk = 0
    for hl, wl, n_chunks in level_chunks:
        # Hoisted per-level coordinate scaling: once per pixel tile, not per chunk.
        sy = gy * (hl - 1.0)             # (1, TP)
        sx = gx * (wl - 1.0)             # (1, TP)
        for _ in range(n_chunks):
            lo = chunk * k_chunk
            hi = lo + k_chunk
            hidx = table_ref[lo:hi, 0:1]     # (KC, 1) texel row index
            widx = table_ref[lo:hi, 1:2]     # (KC, 1) texel col index

            # f32 subtraction preserves the fractional offset even for large levels;
            # the hat/relu/product math runs in weight_dtype (bf16 on v6e/v7x ->
            # packed 2x VALU rate and native bf16 MXU feed).
            dy = (sy - hidx).astype(weight_dtype)        # (KC, TP)
            dx = (sx - widx).astype(weight_dtype)        # (KC, TP)
            wy = jnp.maximum(0.0, 1.0 - jnp.abs(dy))
            wx = jnp.maximum(0.0, 1.0 - jnp.abs(dx))
            wgt = (wy * wx).astype(dot_dtype)

            acc = acc + jnp.dot(tex_ref[:, lo:hi], wgt,
                                preferred_element_type=jnp.float32)
            chunk += 1
        # TODO(synk): switch to lax.fori_loop(unroll=2-4) with acc as carry when the
        # chunk count grows beyond ~16 (real texture sizes).

    out_ref[0] = acc * msk               # mask broadcast over channels (sublanes)


def _resolve_precision(precision):
    if precision != "auto":
        return precision
    try:
        kind = jax.devices()[0].device_kind.lower()
    except Exception:
        return "float32"
    if ("v6" in kind) or ("v7" in kind) or ("7x" in kind):
        return "bf16"        # bf16 VALU weight math + bf16 MXU operands
    if "tpu" in kind:
        return "bf16_mxu"    # v5e & older: f32 VALU (no bf16 ALU), bf16 MXU operands
    return "float32"


def texture_forward(x, x_msk, params, *, tile_p=None, k_chunk=None, precision="auto"):
    """x: (B, Ho, Wo, 2) in [0,1]; x_msk: (B, Ho, Wo); params: 4 x (1, C, Hl, Wl).
    Returns (B, C, Ho, Wo) float32, matching the PyTorch module."""
    B, Ho, Wo, _ = x.shape
    C = params[0].shape[1]
    P = Ho * Wo

    precision = _resolve_precision(precision)
    if precision == "bf16":
        weight_dtype, dot_dtype = jnp.bfloat16, jnp.bfloat16
    elif precision == "bf16_mxu":
        weight_dtype, dot_dtype = jnp.float32, jnp.bfloat16
    else:
        weight_dtype, dot_dtype = jnp.float32, jnp.float32

    level_dims = [(int(p.shape[2]), int(p.shape[3])) for p in params]
    max_level_hw = max(h * w for h, w in level_dims)

    # Wider contraction / pixel tiles only when bf16 keeps vreg pressure in check and
    # the problem is big enough to amortize the extra padding / per-step overhead.
    if k_chunk is None:
        k_chunk = 256 if (weight_dtype == jnp.bfloat16 and max_level_hw >= 512) else 128
    if tile_p is None:
        tile_p = 256 if (weight_dtype == jnp.bfloat16 and P >= 1024) else 128

    P_pad = pl.cdiv(P, tile_p) * tile_p

    # ---- pack coords + mask lane-dense: (B, 3, P_pad), rows = [gx, gy, msk] ----
    coords = jnp.transpose(x.reshape(B, P, 2), (0, 2, 1)).astype(jnp.float32)
    msk = x_msk.reshape(B, 1, P).astype(jnp.float32)
    packed = jnp.concatenate([coords, msk], axis=1)          # (B, 3, P)
    if P_pad != P:
        packed = jnp.pad(packed, ((0, 0), (0, 0), (0, P_pad - P)))

    # ---- concatenate pyramid levels along HW, chunk-aligned per level -----------
    tex_parts, hidx_parts, widx_parts, level_chunks = [], [], [], []
    for p, (hl, wl) in zip(params, level_dims):
        hw = hl * wl
        hw_pad_l = pl.cdiv(hw, k_chunk) * k_chunk
        part = jnp.reshape(p[0].astype(jnp.float32), (C, hw))
        if hw_pad_l != hw:
            part = jnp.pad(part, ((0, 0), (0, hw_pad_l - hw)))   # zero texels -> 0 contrib
        tex_parts.append(part)
        jj = np.arange(hw)
        hidx = np.full(hw_pad_l, -4.0, np.float32)   # sentinel (tex is zero there anyway)
        widx = np.full(hw_pad_l, -4.0, np.float32)
        hidx[:hw] = jj // wl
        widx[:hw] = jj % wl
        hidx_parts.append(hidx)
        widx_parts.append(widx)
        level_chunks.append((hl, wl, hw_pad_l // k_chunk))
    tex = jnp.concatenate(tex_parts, axis=1).astype(dot_dtype)   # (C, HW_pad)
    HW_pad = int(tex.shape[1])
    # Only the two index columns survive (Hl-1 / Wl-1 folded into hoisted sy/sx).
    table = jnp.asarray(
        np.stack([np.concatenate(hidx_parts), np.concatenate(widx_parts)], axis=1))

    kernel = functools.partial(
        _texture_kernel, tile_p=tile_p, k_chunk=k_chunk, feat=C,
        level_chunks=tuple(level_chunks),
        weight_dtype=weight_dtype, dot_dtype=dot_dtype)

    # ---- explicit VMEM budget (v7x: 64 MiB physical / 32 MiB default scoped) ----
    dot_bytes = 2 if dot_dtype == jnp.bfloat16 else 4
    rup8 = lambda n: ((n + 7) // 8) * 8
    est = 2 * (rup8(C) * HW_pad * dot_bytes        # texture block (double-buffered)
               + HW_pad * 128 * 4                  # table block (lanes pad 2 -> 128)
               + 8 * tile_p * 4                    # packed coords/mask block
               + rup8(C) * tile_p * 4)             # output block
    vmem_limit = int(max(32 << 20, min(64 << 20, 4 * est)))

    grid = (B, P_pad // tile_p)
    out = pl.pallas_call(
        kernel,
        out_shape=jax.ShapeDtypeStruct((B, C, P_pad), jnp.float32),
        grid_spec=pltpu.PrefetchScalarGridSpec(
            num_scalar_prefetch=0,
            grid=grid,
            in_specs=[
                pl.BlockSpec((1, 3, tile_p), lambda b, t: (b, 0, t)),
                # TODO(synk): single-buffer these two constant operands at production
                # HW sizes (pipeline_mode=pl.Buffered(1)) to halve their VMEM residency.
                pl.BlockSpec((HW_pad, 2), lambda b, t: (0, 0)),
                pl.BlockSpec((C, HW_pad), lambda b, t: (0, 0)),
            ],
            out_specs=pl.BlockSpec((1, C, tile_p), lambda b, t: (b, 0, t)),
        ),
        compiler_params=pltpu.CompilerParams(
            dimension_semantics=("parallel", "parallel"),   # megacore-shardable axes
            vmem_limit_bytes=vmem_limit),
    )(packed, table, tex)

    if P_pad != P:
        out = out[:, :, :P]
    return out.reshape(B, C, Ho, Wo)                         # free reshape, no transpose


# ---------------- pure-numpy reference (PyTorch grid_sample semantics) -------

def _ref_grid_sample(tex, gx, gy):
    """tex: (C, Hin, Win); gx, gy: (P,) in [-1,1]; bilinear, align_corners=True,
    padding_mode=zeros. Returns (C, P)."""
    C, hin, win = tex.shape
    ix = (gx + 1.0) * 0.5 * (win - 1)
    iy = (gy + 1.0) * 0.5 * (hin - 1)
    x0 = np.floor(ix).astype(np.int64); x1 = x0 + 1
    y0 = np.floor(iy).astype(np.int64); y1 = y0 + 1
    wx1 = ix - x0; wx0 = 1.0 - wx1
    wy1 = iy - y0; wy0 = 1.0 - wy1

    def fetch(yy, xx):
        inb = ((yy >= 0) & (yy < hin) & (xx >= 0) & (xx < win)).astype(np.float32)
        yyc = np.clip(yy, 0, hin - 1)
        xxc = np.clip(xx, 0, win - 1)
        return tex[:, yyc, xxc] * inb[None, :]

    return (fetch(y0, x0) * (wy0 * wx0)[None]
            + fetch(y0, x1) * (wy0 * wx1)[None]
            + fetch(y1, x0) * (wy1 * wx0)[None]
            + fetch(y1, x1) * (wy1 * wx1)[None])


def _reference(x, x_msk, params):
    x = np.asarray(x, np.float32)
    x_msk = np.asarray(x_msk, np.float32)
    B, Ho, Wo, _ = x.shape
    C = params[0].shape[1]
    out = np.zeros((B, C, Ho, Wo), np.float32)
    for b in range(B):
        g = x[b].reshape(-1, 2) * 2.0 - 1.0
        acc = np.zeros((C, Ho * Wo), np.float32)
        for p in params:
            acc += _ref_grid_sample(np.asarray(p, np.float32)[0], g[:, 0], g[:, 1])
        acc *= x_msk[b].reshape(1, -1)
        out[b] = acc.reshape(C, Ho, Wo)
    return out


if __name__ == "__main__":
    key = jax.random.PRNGKey(0)
    W, H, feature_dim = 16, 16, 8
    batch, Ho, Wo = 2, 16, 16

    k1, k2, k3, k4, kx, km = jax.random.split(key, 6)
    params = [
        jax.random.normal(k1, (1, feature_dim, W, H), jnp.float32),
        jax.random.normal(k2, (1, feature_dim, W // 2, H // 2), jnp.float32),
        jax.random.normal(k3, (1, feature_dim, W // 4, H // 4), jnp.float32),
        jax.random.normal(k4, (1, feature_dim, W // 8, H // 8), jnp.float32),
    ]
    # sampling coords slightly outside [0,1] to exercise zeros padding
    x = jax.random.uniform(kx, (batch, Ho, Wo, 2), jnp.float32,
                           minval=-0.1, maxval=1.1)
    x_msk = (jax.random.uniform(km, (batch, Ho, Wo)) > 0.3).astype(jnp.float32)

    y_ref = _reference(x, x_msk, params)

    # 1) exact f32 path: tight tolerance against the PyTorch-semantics reference.
    y32 = jax.block_until_ready(texture_forward(x, x_msk, params, precision="float32"))
    np.testing.assert_allclose(np.asarray(y32), y_ref, rtol=1e-4, atol=1e-4)

    # 2) device-tuned performance path (bf16 weight math on v6e/v7x, bf16 MXU operands
    #    on v5e/others); validated at bf16-appropriate tolerance.
    prec = _resolve_precision("auto")
    y_fast = jax.block_until_ready(texture_forward(x, x_msk, params, precision=prec))
    if prec == "float32":
        np.testing.assert_allclose(np.asarray(y_fast), y_ref, rtol=1e-4, atol=1e-4)
    else:
        np.testing.assert_allclose(np.asarray(y_fast), y_ref, rtol=1e-1, atol=2e-1)

    print("KERNEL_OK")
</pallas_src>

<mosaic_0001>
module attributes {stable_mosaic.version = 11 : i64} {
  func.func @_texture_kernel(%arg0: i32, %arg1: i32, %arg2: memref<1x3x128xf32, #tpu.memory_space<vmem>>, %arg3: memref<640x2xf32, #tpu.memory_space<vmem>>, %arg4: memref<8x640xf32, #tpu.memory_space<vmem>>, %arg5: memref<1x8x128xf32, #tpu.memory_space<vmem>>) attributes {dimension_semantics = [#tpu.dimension_semantics<parallel>, #tpu.dimension_semantics<parallel>], iteration_bounds = array<i64: 2, 2>, scalar_prefetch = 0 : i64, scratch_operands = 0 : i64, tpu.core_type = #tpu.core_type<tc>, window_params = [{transform_indices = @transform_0, window_bounds = array<i64: 1, 3, 128>}, {pipeline_mode = #tpu.pipeline_mode<synchronous>, transform_indices = @transform_1, window_bounds = array<i64: 640, 2>}, {pipeline_mode = #tpu.pipeline_mode<synchronous>, transform_indices = @transform_2, window_bounds = array<i64: 8, 640>}, {transform_indices = @transform_3, window_bounds = array<i64: 1, 8, 128>}]} {
    %c0 = arith.constant 0 : index
    %c0_0 = arith.constant 0 : index
    %c0_1 = arith.constant 0 : index
    %0 = vector.load %arg2[%c0, %c0_0, %c0_1] : memref<1x3x128xf32, #tpu.memory_space<vmem>>, vector<1x3x128xf32>
    %1 = vector.shape_cast %0 : vector<1x3x128xf32> to vector<3x128xf32>
    %2 = vector.extract_strided_slice %1 {offsets = [0, 0], sizes = [1, 128], strides = [1, 1]} : vector<3x128xf32> to vector<1x128xf32>
    %3 = vector.extract_strided_slice %1 {offsets = [1, 0], sizes = [1, 128], strides = [1, 1]} : vector<3x128xf32> to vector<1x128xf32>
    %4 = vector.extract_strided_slice %1 {offsets = [2, 0], sizes = [1, 128], strides = [1, 1]} : vector<3x128xf32> to vector<1x128xf32>
    %cst = arith.constant 0.000000e+00 : f32
    %5 = vector.broadcast %cst : f32 to vector<8x128xf32>
    %cst_2 = arith.constant 1.500000e+01 : f32
    %6 = vector.broadcast %cst_2 : f32 to vector<1x128xf32>
    %7 = arith.mulf %3, %6 : vector<1x128xf32>
    %cst_3 = arith.constant 1.500000e+01 : f32
    %8 = vector.broadcast %cst_3 : f32 to vector<1x128xf32>
    %9 = arith.mulf %2, %8 : vector<1x128xf32>
    %c0_4 = arith.constant 0 : index
    %c0_5 = arith.constant 0 : index
    %10 = vector.load %arg3[%c0_4, %c0_5] : memref<640x2xf32, #tpu.memory_space<vmem>>, vector<128x1xf32>
    %c0_6 = arith.constant 0 : index
    %c1 = arith.constant 1 : index
    %11 = vector.load %arg3[%c0_6, %c1] : memref<640x2xf32, #tpu.memory_space<vmem>>, vector<128x1xf32>
    %12 = vector.broadcast %7 : vector<1x128xf32> to vector<128x128xf32>
    %13 = vector.broadcast %10 : vector<128x1xf32> to vector<128x128xf32>
    %14 = arith.subf %12, %13 : vector<128x128xf32>
    %15 = vector.broadcast %9 : vector<1x128xf32> to vector<128x128xf32>
    %16 = vector.broadcast %11 : vector<128x1xf32> to vector<128x128xf32>
    %17 = arith.subf %15, %16 : vector<128x128xf32>
    %18 = math.absf %14 : vector<128x128xf32>
    %cst_7 = arith.constant 1.000000e+00 : f32
    %19 = vector.broadcast %cst_7 : f32 to vector<128x128xf32>
    %20 = arith.subf %19, %18 : vector<128x128xf32>
    %cst_8 = arith.constant 0.000000e+00 : f32
    %21 = vector.broadcast %cst_8 : f32 to vector<128x128xf32>
    %22 = arith.maximumf %21, %20 : vector<128x128xf32>
    %23 = math.absf %17 : vector<128x128xf32>
    %cst_9 = arith.constant 1.000000e+00 : f32
    %24 = vector.broadcast %cst_9 : f32 to vector<128x128xf32>
    %25 = arith.subf %24, %23 : vector<128x128xf32>
    %cst_10 = arith.constant 0.000000e+00 : f32
    %26 = vector.broadcast %cst_10 : f32 to vector<128x128xf32>
    %27 = arith.maximumf %26, %25 : vector<128x128xf32>
    %28 = arith.mulf %22, %27 : vector<128x128xf32>
    %c0_11 = arith.constant 0 : index
    %c0_12 = arith.constant 0 : index
    %29 = vector.load %arg4[%c0_11, %c0_12] : memref<8x640xf32, #tpu.memory_space<vmem>>, vector<8x128xf32>
    %cst_13 = arith.constant dense<0.000000e+00> : vector<8x128xf32>
    %30 = tpu.matmul %29, %28, %cst_13 {dimension_numbers = #tpu.dot_dimension_numbers<[1], [0], [0], [1], [0, 0, 1, 1], [], []>} : vector<8x128xf32>, vector<128x128xf32>, vector<8x128xf32> -> vector<8x128xf32>
    %31 = arith.addf %5, %30 : vector<8x128xf32>
    %c128 = arith.constant 128 : index
    %c0_14 = arith.constant 0 : index
    %32 = vector.load %arg3[%c128, %c0_14] : memref<640x2xf32, #tpu.memory_space<vmem>>, vector<128x1xf32>
    %c128_15 = arith.constant 128 : index
    %c1_16 = arith.constant 1 : index
    %33 = vector.load %arg3[%c128_15, %c1_16] : memref<640x2xf32, #tpu.memory_space<vmem>>, vector<128x1xf32>
    %34 = vector.broadcast %7 : vector<1x128xf32> to vector<128x128xf32>
    %35 = vector.broadcast %32 : vector<128x1xf32> to vector<128x128xf32>
    %36 = arith.subf %34, %35 : vector<128x128xf32>
    %37 = vector.broadcast %9 : vector<1x128xf32> to vector<128x128xf32>
    %38 = vector.broadcast %33 : vector<128x1xf32> to vector<128x128xf32>
    %39 = arith.subf %37, %38 : vector<128x128xf32>
    %40 = math.absf %36 : vector<128x128xf32>
    %cst_17 = arith.constant 1.000000e+00 : f32
    %41 = vector.broadcast %cst_17 : f32 to vector<128x128xf32>
    %42 = arith.subf %41, %40 : vector<128x128xf32>
    %cst_18 = arith.constant 0.000000e+00 : f32
    %43 = vector.broadcast %cst_18 : f32 to vector<128x128xf32>
    %44 = arith.maximumf %43, %42 : vector<128x128xf32>
    %45 = math.absf %39 : vector<128x128xf32>
    %cst_19 = arith.constant 1.000000e+00 : f32
    %46 = vector.broadcast %cst_19 : f32 to vector<128x128xf32>
    %47 = arith.subf %46, %45 : vector<128x128xf32>
    %cst_20 = arith.constant 0.000000e+00 : f32
    %48 = vector.broadcast %cst_20 : f32 to vector<128x128xf32>
    %49 = arith.maximumf %48, %47 : vector<128x128xf32>
    %50 = arith.mulf %44, %49 : vector<128x128xf32>
    %c0_21 = arith.constant 0 : index
    %c128_22 = arith.constant 128 : index
    %51 = vector.load %arg4[%c0_21, %c128_22] : memref<8x640xf32, #tpu.memory_space<vmem>>, vector<8x128xf32>
    %cst_23 = arith.constant dense<0.000000e+00> : vector<8x128xf32>
    %52 = tpu.matmul %51, %50, %cst_23 {dimension_numbers = #tpu.dot_dimension_numbers<[1], [0], [0], [1], [0, 0, 1, 1], [], []>} : vector<8x128xf32>, vector<128x128xf32>, vector<8x128xf32> -> vector<8x128xf32>
    %53 = arith.addf %31, %52 : vector<8x128xf32>
    %cst_24 = arith.constant 7.000000e+00 : f32
    %54 = vector.broadcast %cst_24 : f32 to vector<1x128xf32>
    %55 = arith.mulf %3, %54 : vector<1x128xf32>
    %cst_25 = arith.constant 7.000000e+00 : f32
    %56 = vector.broadcast %cst_25 : f32 to vector<1x128xf32>
    %57 = arith.mulf %2, %56 : vector<1x128xf32>
    %c256 = arith.constant 256 : index
    %c0_26 = arith.constant 0 : index
    %58 = vector.load %arg3[%c256, %c0_26] : memref<640x2xf32, #tpu.memory_space<vmem>>, vector<128x1xf32>
    %c256_27 = arith.constant 256 : index
    %c1_28 = arith.constant 1 : index
    %59 = vector.load %arg3[%c256_27, %c1_28] : memref<640x2xf32, #tpu.memory_space<vmem>>, vector<128x1xf32>
    %60 = vector.broadcast %55 : vector<1x128xf32> to vector<128x128xf32>
    %61 = vector.broadcast %58 : vector<128x1xf32> to vector<128x128xf32>
    %62 = arith.subf %60, %61 : vector<128x128xf32>
    %63 = vector.broadcast %57 : vector<1x128xf32> to vector<128x128xf32>
    %64 = vector.broadcast %59 : vector<128x1xf32> to vector<128x128xf32>
    %65 = arith.subf %63, %64 : vector<128x128xf32>
    %66 = math.absf %62 : vector<128x128xf32>
    %cst_29 = arith.constant 1.000000e+00 : f32
    %67 = vector.broadcast %cst_29 : f32 to vector<128x128xf32>
    %68 = arith.subf %67, %66 : vector<128x128xf32>
    %cst_30 = arith.constant 0.000000e+00 : f32
    %69 = vector.broadcast %cst_30 : f32 to vector<128x128xf32>
    %70 = arith.maximumf %69, %68 : vector<128x128xf32>
    %71 = math.absf %65 : vector<128x128xf32>
    %cst_31 = arith.constant 1.000000e+00 : f32
    %72 = vector.broadcast %cst_31 : f32 to vector<128x128xf32>
    %73 = arith.subf %72, %71 : vector<128x128xf32>
    %cst_32 = arith.constant 0.000000e+00 : f32
    %74 = vector.broadcast %cst_32 : f32 to vector<128x128xf32>
    %75 = arith.maximumf %74, %73 : vector<128x128xf32>
    %76 = arith.mulf %70, %75 : vector<128x128xf32>
    %c0_33 = arith.constant 0 : index
    %c256_34 = arith.constant 256 : index
    %77 = vector.load %arg4[%c0_33, %c256_34] : memref<8x640xf32, #tpu.memory_space<vmem>>, vector<8x128xf32>
    %cst_35 = arith.constant dense<0.000000e+00> : vector<8x128xf32>
    %78 = tpu.matmul %77, %76, %cst_35 {dimension_numbers = #tpu.dot_dimension_numbers<[1], [0], [0], [1], [0, 0, 1, 1], [], []>} : vector<8x128xf32>, vector<128x128xf32>, vector<8x128xf32> -> vector<8x128xf32>
    %79 = arith.addf %53, %78 : vector<8x128xf32>
    %cst_36 = arith.constant 3.000000e+00 : f32
    %80 = vector.broadcast %cst_36 : f32 to vector<1x128xf32>
    %81 = arith.mulf %3, %80 : vector<1x128xf32>
    %cst_37 = arith.constant 3.000000e+00 : f32
    %82 = vector.broadcast %cst_37 : f32 to vector<1x128xf32>
    %83 = arith.mulf %2, %82 : vector<1x128xf32>
    %c384 = arith.constant 384 : index
    %c0_38 = arith.constant 0 : index
    %84 = vector.load %arg3[%c384, %c0_38] : memref<640x2xf32, #tpu.memory_space<vmem>>, vector<128x1xf32>
    %c384_39 = arith.constant 384 : index
    %c1_40 = arith.constant 1 : index
    %85 = vector.load %arg3[%c384_39, %c1_40] : memref<640x2xf32, #tpu.memory_space<vmem>>, vector<128x1xf32>
    %86 = vector.broadcast %81 : vector<1x128xf32> to vector<128x128xf32>
    %87 = vector.broadcast %84 : vector<128x1xf32> to vector<128x128xf32>
    %88 = arith.subf %86, %87 : vector<128x128xf32>
    %89 = vector.broadcast %83 : vector<1x128xf32> to vector<128x128xf32>
    %90 = vector.broadcast %85 : vector<128x1xf32> to vector<128x128xf32>
    %91 = arith.subf %89, %90 : vector<128x128xf32>
    %92 = math.absf %88 : vector<128x128xf32>
    %cst_41 = arith.constant 1.000000e+00 : f32
    %93 = vector.broadcast %cst_41 : f32 to vector<128x128xf32>
    %94 = arith.subf %93, %92 : vector<128x128xf32>
    %cst_42 = arith.constant 0.000000e+00 : f32
    %95 = vector.broadcast %cst_42 : f32 to vector<128x128xf32>
    %96 = arith.maximumf %95, %94 : vector<128x128xf32>
    %97 = math.absf %91 : vector<128x128xf32>
    %cst_43 = arith.constant 1.000000e+00 : f32
    %98 = vector.broadcast %cst_43 : f32 to vector<128x128xf32>
    %99 = arith.subf %98, %97 : vector<128x128xf32>
    %cst_44 = arith.constant 0.000000e+00 : f32
    %100 = vector.broadcast %cst_44 : f32 to vector<128x128xf32>
    %101 = arith.maximumf %100, %99 : vector<128x128xf32>
    %102 = arith.mulf %96, %101 : vector<128x128xf32>
    %c0_45 = arith.constant 0 : index
    %c384_46 = arith.constant 384 : index
    %103 = vector.load %arg4[%c0_45, %c384_46] : memref<8x640xf32, #tpu.memory_space<vmem>>, vector<8x128xf32>
    %cst_47 = arith.constant dense<0.000000e+00> : vector<8x128xf32>
    %104 = tpu.matmul %103, %102, %cst_47 {dimension_numbers = #tpu.dot_dimension_numbers<[1], [0], [0], [1], [0, 0, 1, 1], [], []>} : vector<8x128xf32>, vector<128x128xf32>, vector<8x128xf32> -> vector<8x128xf32>
    %105 = arith.addf %79, %104 : vector<8x128xf32>
    %cst_48 = arith.constant 1.000000e+00 : f32
    %106 = vector.broadcast %cst_48 : f32 to vector<1x128xf32>
    %107 = arith.mulf %3, %106 : vector<1x128xf32>
    %cst_49 = arith.constant 1.000000e+00 : f32
    %108 = vector.broadcast %cst_49 : f32 to vector<1x128xf32>
    %109 = arith.mulf %2, %108 : vector<1x128xf32>
    %c512 = arith.constant 512 : index
    %c0_50 = arith.constant 0 : index
    %110 = vector.load %arg3[%c512, %c0_50] : memref<640x2xf32, #tpu.memory_space<vmem>>, vector<128x1xf32>
    %c512_51 = arith.constant 512 : index
    %c1_52 = arith.constant 1 : index
    %111 = vector.load %arg3[%c512_51, %c1_52] : memref<640x2xf32, #tpu.memory_space<vmem>>, vector<128x1xf32>
    %112 = vector.broadcast %107 : vector<1x128xf32> to vector<128x128xf32>
    %113 = vector.broadcast %110 : vector<128x1xf32> to vector<128x128xf32>
    %114 = arith.subf %112, %113 : vector<128x128xf32>
    %115 = vector.broadcast %109 : vector<1x128xf32> to vector<128x128xf32>
    %116 = vector.broadcast %111 : vector<128x1xf32> to vector<128x128xf32>
    %117 = arith.subf %115, %116 : vector<128x128xf32>
    %118 = math.absf %114 : vector<128x128xf32>
    %cst_53 = arith.constant 1.000000e+00 : f32
    %119 = vector.broadcast %cst_53 : f32 to vector<128x128xf32>
    %120 = arith.subf %119, %118 : vector<128x128xf32>
    %cst_54 = arith.constant 0.000000e+00 : f32
    %121 = vector.broadcast %cst_54 : f32 to vector<128x128xf32>
    %122 = arith.maximumf %121, %120 : vector<128x128xf32>
    %123 = math.absf %117 : vector<128x128xf32>
    %cst_55 = arith.constant 1.000000e+00 : f32
    %124 = vector.broadcast %cst_55 : f32 to vector<128x128xf32>
    %125 = arith.subf %124, %123 : vector<128x128xf32>
    %cst_56 = arith.constant 0.000000e+00 : f32
    %126 = vector.broadcast %cst_56 : f32 to vector<128x128xf32>
    %127 = arith.maximumf %126, %125 : vector<128x128xf32>
    %128 = arith.mulf %122, %127 : vector<128x128xf32>
    %c0_57 = arith.constant 0 : index
    %c512_58 = arith.constant 512 : index
    %129 = vector.load %arg4[%c0_57, %c512_58] : memref<8x640xf32, #tpu.memory_space<vmem>>, vector<8x128xf32>
    %cst_59 = arith.constant dense<0.000000e+00> : vector<8x128xf32>
    %130 = tpu.matmul %129, %128, %cst_59 {dimension_numbers = #tpu.dot_dimension_numbers<[1], [0], [0], [1], [0, 0, 1, 1], [], []>} : vector<8x128xf32>, vector<128x128xf32>, vector<8x128xf32> -> vector<8x128xf32>
    %131 = arith.addf %105, %130 : vector<8x128xf32>
    %132 = vector.broadcast %4 : vector<1x128xf32> to vector<8x128xf32>
    %133 = arith.mulf %131, %132 : vector<8x128xf32>
    %c0_60 = arith.constant 0 : index
    %c0_61 = arith.constant 0 : index
    %c0_62 = arith.constant 0 : index
    %134 = vector.load %arg5[%c0_60, %c0_61, %c0_62] : memref<1x8x128xf32, #tpu.memory_space<vmem>>, vector<1x8x128xf32>
    %135 = vector.shape_cast %134 : vector<1x8x128xf32> to vector<8x128xf32>
    %136 = vector.shape_cast %133 : vector<8x128xf32> to vector<1x8x128xf32>
    tpu.vector_store %arg5[%c0_60, %c0_61, %c0_62], %136 {strides = array<i32>} : memref<1x8x128xf32, #tpu.memory_space<vmem>>, vector<1x8x128xf32>,
    return
  }
  func.func @transform_0(%arg0: i32, %arg1: i32) -> (i32, i32, i32) {
    %c0_i32 = arith.constant 0 : i32
    %c0_i32_0 = arith.constant 0 : i32
    return %arg0, %c0_i32, %arg1 : i32, i32, i32
  }
  func.func @transform_1(%arg0: i32, %arg1: i32) -> (i32, i32) {
    %c0_i32 = arith.constant 0 : i32
    %c0_i32_0 = arith.constant 0 : i32
    %c0_i32_1 = arith.constant 0 : i32
    return %c0_i32, %c0_i32_0 : i32, i32
  }
  func.func @transform_2(%arg0: i32, %arg1: i32) -> (i32, i32) {
    %c0_i32 = arith.constant 0 : i32
    %c0_i32_0 = arith.constant 0 : i32
    %c0_i32_1 = arith.constant 0 : i32
    return %c0_i32, %c0_i32_0 : i32, i32
  }
  func.func @transform_3(%arg0: i32, %arg1: i32) -> (i32, i32, i32) {
    %c0_i32 = arith.constant 0 : i32
    %c0_i32_0 = arith.constant 0 : i32
    return %arg0, %c0_i32, %arg1 : i32, i32, i32
  }
}

</mosaic_0001>

<llo_original>
// kernel: tpu_custom_call.1
$region0: #{tpu_custom_call.1}
  #allocation0 [shape = 'u32[]', space=smem, size = 0x4, offset = 0x4, fixed_abs, tag = 'smem constant byte address 0x4 - core index']
  #allocation1 [shape = 'u32[144,128]{1,0:T(1,128)}', space=vmem, size = 0x12000, scoped, tag = 'internal scratch']
  %s0 = inlined_call_operand.vmem [shape: f32[2,3,256], index: 0, kind: input, shape index: {}]
  %s1 = inlined_call_operand.vmem [shape: f32[640,2], index: 1, kind: input, shape index: {}]
  %s2 = inlined_call_operand.vmem [shape: f32[8,640], index: 2, kind: input, shape index: {}]
  %s3 = inlined_call_operand.hbm [shape: f32[2,8,256], index: 3, kind: output, shape index: {}]
  %s4 = sld [smem:[#allocation0]]
  $region45: #{tpu_custom_call.1} parent=0
    _
  %s6 = ssub.s32 1, %s4
  %s7 = scalar_select 0, %s6, %s4
  $region1: #{tpu_custom_call.1} parent=0
    #allocation2 [shape = 'u8[8192]{0}', space=vmem, size = 0x2000, scoped, tag = 'output window, operand 0']
    #allocation3 [shape = 's32[2]{0}', space=sflag, size = 0x8, scoped, tag = 'scoped memory for tpu_custom_call.1']
    %8 = vsyncpa [#allocation3], 0
    %s9 = scalar_lea.sflag [#allocation3], 1
    %10 = vsyncpa %s9, 0
    loop: start=0, step=1, limit=6
    $region2: #{tpu_custom_call.1} parent=1 // loop_pre_header
      _
    $region3: #{tpu_custom_call.1} parent=1 // loop_header
      %s12 = sphi 0, %s16
      %p13 = scmp.ge.s32.totalorder %s12, 6
      %s19 = sphi 0, %s31
      %s20 = sphi 0, %s27
      %s21 = sphi 0, %s19
      %s22 = sphi 0, %s20
      %s23 = sphi 0, %s21
      %s24 = sphi 0, %s22
      %s36 = sphi 0, %s38
      %s39 = sphi 0, %s36
      %s40 = sphi 0, %s39
      %s56 = sphi 0, %s40
      %s60 = sphi 0, %s60
      %s62 = sphi 0, %s60
      %s63 = sphi 0, %s62
      %s77 = sphi 0, %s63
      %s81 = sphi 0, %s81
      %s83 = sphi 0, %s81
      %s84 = sphi 0, %s83
      %s98 = sphi 0, %s84
      %s106 = sphi 0, %s108
      %s109 = sphi 0, %s106
      %s110 = sphi 0, %s109
      %s126 = sphi 0, %s110
    $region4: #{tpu_custom_call.1} parent=1 // loop_header_branch
      %15 = sbr.rel (%p13) target = $region8
    $region5: #{tpu_custom_call.1} parent=1 // loop_body
      %s17 = ssub.s32 %s12, 1
      %s18 = ssub.s32 %s12, 2
      %s25 = sadd.s32 1, %s20
      %p26 = scmp.ge.s32.totalorder %s25, 2
      %s27 = scalar_select %p26, 0, %s25
      %s28 = sadd.s32 1, %s19
      %s29 = scalar_select %p26, %s28, %s19
      %p30 = scmp.ge.s32.totalorder %s29, 2
      %s31 = scalar_select %p30, 0, %s29
      %s32 = ssub.s32 %s19, %s31
      %s33 = ssub.s32 %s20, %s27
      %s34 = sor.u32 %s32, %s33
      %p35 = scmp.eq.s32.totalorder %s34, 0
      %s37 = sadd.s32 %s36, 1
      %s38 = scalar_select %p35, %s36, %s37
      %p41 = pneg %p35
      %p42 = scmp.eq.s32.totalorder %s12, 3
      %p43 = por %p41, %p42
      %p44 = scmp.ne.s32.totalorder %s36, %s39
      %p45 = scmp.eq.s32.totalorder %s12, 0
      %p46 = por %p44, %p45
      %p47 = scmp.ne.s32.totalorder %s36, %s39
      %p48 = scmp.eq.s32.totalorder %s17, 3
      %p49 = por %p47, %p48
      %p50 = scmp.ne.s32.totalorder %s39, %s40
      %p51 = scmp.eq.s32.totalorder %s17, 0
      %p52 = por %p50, %p51
      %p53 = scmp.ne.s32.totalorder %s39, %s40
      %p54 = scmp.eq.s32.totalorder %s18, 3
      %p55 = por %p53, %p54
      %p57 = scmp.ne.s32.totalorder %s40, %s56
      %p58 = scmp.eq.s32.totalorder %s18, 0
      %p59 = por %p57, %p58
      %s61 = sadd.s32 %s60, 1
      %p64 = scmp.eq.s32.totalorder %s12, 3
      %p65 = scmp.ne.s32.totalorder %s60, %s62
      %p66 = scmp.eq.s32.totalorder %s12, 0
      %p67 = por %p65, %p66
      %p68 = scmp.ne.s32.totalorder %s60, %s62
      %p69 = scmp.eq.s32.totalorder %s17, 3
      %p70 = por %p68, %p69
      %p71 = scmp.ne.s32.totalorder %s62, %s63
      %p72 = scmp.eq.s32.totalorder %s17, 0
      %p73 = por %p71, %p72
      %p74 = scmp.ne.s32.totalorder %s62, %s63
      %p75 = scmp.eq.s32.totalorder %s18, 3
      %p76 = por %p74, %p75
      %p78 = scmp.ne.s32.totalorder %s63, %s77
      %p79 = scmp.eq.s32.totalorder %s18, 0
      %p80 = por %p78, %p79
      %s82 = sadd.s32 %s81, 1
      %p85 = scmp.eq.s32.totalorder %s12, 3
      %p86 = scmp.ne.s32.totalorder %s81, %s83
      %p87 = scmp.eq.s32.totalorder %s12, 0
      %p88 = por %p86, %p87
      %p89 = scmp.ne.s32.totalorder %s81, %s83
      %p90 = scmp.eq.s32.totalorder %s17, 3
      %p91 = por %p89, %p90
      %p92 = scmp.ne.s32.totalorder %s83, %s84
      %p93 = scmp.eq.s32.totalorder %s17, 0
      %p94 = por %p92, %p93
      %p95 = scmp.ne.s32.totalorder %s83, %s84
      %p96 = scmp.eq.s32.totalorder %s18, 3
      %p97 = por %p95, %p96
      %p99 = scmp.ne.s32.totalorder %s84, %s98
      %p100 = scmp.eq.s32.totalorder %s18, 0
      %p101 = por %p99, %p100
      %s102 = ssub.s32 %s19, %s31
      %s103 = ssub.s32 %s20, %s27
      %s104 = sor.u32 %s102, %s103
      %p105 = scmp.eq.s32.totalorder %s104, 0
      %s107 = sadd.s32 %s106, 1
      %s108 = scalar_select %p105, %s106, %s107
      %p111 = pneg %p105
      %p112 = scmp.eq.s32.totalorder %s12, 3
      %p113 = por %p111, %p112
      %p114 = scmp.ne.s32.totalorder %s106, %s109
      %p115 = scmp.eq.s32.totalorder %s12, 0
      %p116 = por %p114, %p115
      %p117 = scmp.ne.s32.totalorder %s106, %s109
      %p118 = scmp.eq.s32.totalorder %s17, 3
      %p119 = por %p117, %p118
      %p120 = scmp.ne.s32.totalorder %s109, %s110
      %p121 = scmp.eq.s32.totalorder %s17, 0
      %p122 = por %p120, %p121
      %p123 = scmp.ne.s32.totalorder %s109, %s110
      %p124 = scmp.eq.s32.totalorder %s18, 3
      %p125 = por %p123, %p124
      %p127 = scmp.ne.s32.totalorder %s110, %s126
      %p128 = scmp.eq.s32.totalorder %s18, 0
      %p129 = por %p127, %p128
      %p130 = scmp.le.s32.totalorder 1, %s12
      %p131 = scmp.lt.s32.totalorder %s12, 5
      %p132 = pnand %p130, %p131
      %p133 = pneg %p132
      // Predicated region
      $region9: #{tpu_custom_call.1} parent=5 // pred_check
        _
      $region10: #{tpu_custom_call.1} parent=5 // pred_check_branch
        %135 = sbr.rel (%p132) target = $region12
      $region11: #{tpu_custom_call.1} parent=5 // pred_region
        %s136 = ssub.s32 %s12, 1
        // Predicated region
        $region13: #{tpu_custom_call.1} parent=11 // pred_check
          %p137 = pneg %p73
        $region14: #{tpu_custom_call.1} parent=11 // pred_check_branch
          %139 = sbr.rel (%p137) target = $region16
        $region15: #{tpu_custom_call.1} parent=11 // pred_region
          _
        $region16: #{tpu_custom_call.1} parent=11 // pred_fallthru
          _
        // Predicated region
        $region17: #{tpu_custom_call.1} parent=11 // pred_check
          %p140 = pneg %p94
        $region18: #{tpu_custom_call.1} parent=11 // pred_check_branch
          %142 = sbr.rel (%p140) target = $region20
        $region19: #{tpu_custom_call.1} parent=11 // pred_region
          _
        $region20: #{tpu_custom_call.1} parent=11 // pred_fallthru
          _
      $region12: #{tpu_custom_call.1} parent=5 // pred_fallthru
        _
      %p143 = scmp.lt.s32.totalorder %s12, 4
      // Predicated region
      $region21: #{tpu_custom_call.1} parent=5 // pred_check
        %p144 = pneg %p143
      $region22: #{tpu_custom_call.1} parent=5 // pred_check_branch
        %146 = sbr.rel (%p144) target = $region24
      $region23: #{tpu_custom_call.1} parent=5 // pred_region
        // Predicated region
        $region25: #{tpu_custom_call.1} parent=23 // pred_check
          %p147 = pneg %p46
        $region26: #{tpu_custom_call.1} parent=23 // pred_check_branch
          %149 = sbr.rel (%p147) target = $region28
        $region27: #{tpu_custom_call.1} parent=23 // pred_region
          %p150 = scmp.lt.s32.totalorder %s19, 1
          %s151 = scalar_select %p150, %s19, 1
          %p152 = scmp.lt.s32.totalorder %s20, 1
          %s153 = scalar_select %p152, %s20, 1
          %s154 = smul.addr %s151, 2
          %s155 = sadd.s32 %s153, %s154
          %s156 = smul.addr %s155, 4
          %s157 = scalar_lea.vmem %s0, %s156
        $region28: #{tpu_custom_call.1} parent=23 // pred_fallthru
          _
      $region24: #{tpu_custom_call.1} parent=5 // pred_fallthru
        _
      %p158 = scmp.le.s32.totalorder 1, %s12
      %p159 = scmp.lt.s32.totalorder %s12, 5
      %p160 = pnand %p158, %p159
      %p161 = pneg %p160
      // Predicated region
      $region29: #{tpu_custom_call.1} parent=5 // pred_check
        _
      $region30: #{tpu_custom_call.1} parent=5 // pred_check_branch
        %163 = sbr.rel (%p160) target = $region32
      $region31: #{tpu_custom_call.1} parent=5 // pred_region
        %s164 = ssub.s32 %s12, 1
        %p165 = scmp.lt.s32.totalorder %s21, 1
        %s166 = scalar_select %p165, %s21, 1
        %p167 = scmp.lt.s32.totalorder %s22, 1
        %s168 = scalar_select %p167, %s22, 1
        %s169 = smul.addr %s166, 2
        %s170 = sadd.s32 %s168, %s169
        %s171 = smul.addr %s170, 4
        %s172 = scalar_lea.vmem %s0, %s171
        %p173 = pneg %p52
        %p174 = pneg %p49
        %p175 = pneg %p73
        %p176 = pneg %p70
        %p177 = pneg %p94
        %p178 = pneg %p91
        %p179 = pneg %p122
        %p180 = pneg %p119
        %s181 = sand.u32 %s109, 1
        %s182 = scalar_lea.sflag [#allocation3], %s181
        %s183 = sand.u32 %s109, 1
        %s184 = smul.addr %s183, 8
        %s185 = scalar_lea.vmem [#allocation2], %s184
        %p186 = scmp.lt.s32.totalorder %s21, 1
        %s187 = scalar_select %p186, %s21, 1
        %p188 = scmp.lt.s32.totalorder %s22, 1
        %s189 = scalar_select %p188, %s22, 1
        %s190 = smul.addr %s187, 2
        %s191 = sadd.s32 %s189, %s190
        %s192 = smul.addr %s191, 4
        %s193 = scalar_lea.vmem %s0, %s192
        %v194 = vld [vmem:[%s193] sm:$0x7]
        %v195 = vmul.f32 %v194, 15.0
        %v196 = vld [vmem:[%s1] sm:$0xff]
        %v197 = vld [vmem:[%s1 + $0x8] sm:$0xff]
        %v198 = vld [vmem:[%s1 + $0x10] sm:$0xff]
        %v199 = vld [vmem:[%s1 + $0x18] sm:$0xff]
        %v200 = vld [vmem:[%s1 + $0x20] sm:$0xff]
        %v201 = vld [vmem:[%s1 + $0x28] sm:$0xff]
        %v202 = vld [vmem:[%s1 + $0x30] sm:$0xff]
        %v203 = vld [vmem:[%s1 + $0x38] sm:$0xff]
        %v204 = vld [vmem:[%s1 + $0x40] sm:$0xff]
        %v205 = vld [vmem:[%s1 + $0x48] sm:$0xff]
        %v206 = vld [vmem:[%s1 + $0x50] sm:$0xff]
        %v207 = vld [vmem:[%s1 + $0x58] sm:$0xff]
        %v208 = vld [vmem:[%s1 + $0x60] sm:$0xff]
        %v209 = vld [vmem:[%s1 + $0x68] sm:$0xff]
        %v210 = vld [vmem:[%s1 + $0x70] sm:$0xff]
        %v211 = vld [vmem:[%s1 + $0x78] sm:$0xff]
        %v212 = vlaneseq
        %v213 = vshrl.u32 %v212, 7
        %v214 = vsub.s32 1, %v213
        %v215 = vrot.slane %v195, %v214
        %217 = vset.pattern.permute.xlu0 0
        %218 = vperm.xlu0 %217, %v196
        %v219 = vpop.permute.xlu0 %218
        %222 = vset.pattern.permute.xlu0 0
        %223 = vperm.xlu0 %222, %v197
        %v224 = vpop.permute.xlu0 %223
        %227 = vset.pattern.permute.xlu0 0
        %228 = vperm.xlu0 %227, %v198
        %v229 = vpop.permute.xlu0 %228
        %232 = vset.pattern.permute.xlu0 0
        %233 = vperm.xlu0 %232, %v199
        %v234 = vpop.permute.xlu0 %233
        %237 = vset.pattern.permute.xlu0 0
        %238 = vperm.xlu0 %237, %v200
        %v239 = vpop.permute.xlu0 %238
        %242 = vset.pattern.permute.xlu0 0
        %243 = vperm.xlu0 %242, %v201
        %v244 = vpop.permute.xlu0 %243
        %247 = vset.pattern.permute.xlu0 0
        %248 = vperm.xlu0 %247, %v202
        %v249 = vpop.permute.xlu0 %248
        %252 = vset.pattern.permute.xlu0 0
        %253 = vperm.xlu0 %252, %v203
        %v254 = vpop.permute.xlu0 %253
        %257 = vset.pattern.permute.xlu0 0
        %258 = vperm.xlu0 %257, %v204
        %v259 = vpop.permute.xlu0 %258
        %262 = vset.pattern.permute.xlu0 0
        %263 = vperm.xlu0 %262, %v205
        %v264 = vpop.permute.xlu0 %263
        %267 = vset.pattern.permute.xlu0 0
        %268 = vperm.xlu0 %267, %v206
        %v269 = vpop.permute.xlu0 %268
        %272 = vset.pattern.permute.xlu0 0
        %273 = vperm.xlu0 %272, %v207
        %v274 = vpop.permute.xlu0 %273
        %277 = vset.pattern.permute.xlu0 0
        %278 = vperm.xlu0 %277, %v208
        %v279 = vpop.permute.xlu0 %278
        %282 = vset.pattern.permute.xlu0 0
        %283 = vperm.xlu0 %282, %v209
        %v284 = vpop.permute.xlu0 %283
        %287 = vset.pattern.permute.xlu0 0
        %288 = vperm.xlu0 %287, %v210
        %v289 = vpop.permute.xlu0 %288
        %292 = vset.pattern.permute.xlu0 0
        %293 = vperm.xlu0 %292, %v211
        %v294 = vpop.permute.xlu0 %293
        %v296 = vsub.f32 %v215, %v219
        %v297 = vsub.f32 %v215, %v224
        %v298 = vsub.f32 %v215, %v229
        %v299 = vsub.f32 %v215, %v234
        %v300 = vsub.f32 %v215, %v239
        %v301 = vsub.f32 %v215, %v244
        %v302 = vsub.f32 %v215, %v249
        %v303 = vsub.f32 %v215, %v254
        %v304 = vsub.f32 %v215, %v259
        %v305 = vsub.f32 %v215, %v264
        %v306 = vsub.f32 %v215, %v269
        %v307 = vsub.f32 %v215, %v274
        %v308 = vsub.f32 %v215, %v279
        %v309 = vsub.f32 %v215, %v284
        %v310 = vsub.f32 %v215, %v289
        %v311 = vsub.f32 %v215, %v294
        %v312 = vlaneseq
        %v313 = vshrl.u32 %v312, 7
        %v314 = vsub.s32 0, %v313
        %v315 = vrot.slane %v195, %v314
        %316 = vset.pattern.permute.xlu0 1
        %317 = vperm.xlu0 %316, %v196
        %v318 = vpop.permute.xlu0 %317
        %320 = vset.pattern.permute.xlu0 1
        %321 = vperm.xlu0 %320, %v197
        %v322 = vpop.permute.xlu0 %321
        %324 = vset.pattern.permute.xlu0 1
        %325 = vperm.xlu0 %324, %v198
        %v326 = vpop.permute.xlu0 %325
        %328 = vset.pattern.permute.xlu0 1
        %329 = vperm.xlu0 %328, %v199
        %v330 = vpop.permute.xlu0 %329
        %332 = vset.pattern.permute.xlu0 1
        %333 = vperm.xlu0 %332, %v200
        %v334 = vpop.permute.xlu0 %333
        %336 = vset.pattern.permute.xlu0 1
        %337 = vperm.xlu0 %336, %v201
        %v338 = vpop.permute.xlu0 %337
        %340 = vset.pattern.permute.xlu0 1
        %341 = vperm.xlu0 %340, %v202
        %v342 = vpop.permute.xlu0 %341
        %344 = vset.pattern.permute.xlu0 1
        %345 = vperm.xlu0 %344, %v203
        %v346 = vpop.permute.xlu0 %345
        %348 = vset.pattern.permute.xlu0 1
        %349 = vperm.xlu0 %348, %v204
        %v350 = vpop.permute.xlu0 %349
        %352 = vset.pattern.permute.xlu0 1
        %353 = vperm.xlu0 %352, %v205
        %v354 = vpop.permute.xlu0 %353
        %356 = vset.pattern.permute.xlu0 1
        %357 = vperm.xlu0 %356, %v206
        %v358 = vpop.permute.xlu0 %357
        %360 = vset.pattern.permute.xlu0 1
        %361 = vperm.xlu0 %360, %v207
        %v362 = vpop.permute.xlu0 %361
        %364 = vset.pattern.permute.xlu0 1
        %365 = vperm.xlu0 %364, %v208
        %v366 = vpop.permute.xlu0 %365
        %368 = vset.pattern.permute.xlu0 1
        %369 = vperm.xlu0 %368, %v209
        %v370 = vpop.permute.xlu0 %369
        %372 = vset.pattern.permute.xlu0 1
        %373 = vperm.xlu0 %372, %v210
        %v374 = vpop.permute.xlu0 %373
        %376 = vset.pattern.permute.xlu0 1
        %377 = vperm.xlu0 %376, %v211
        %v378 = vpop.permute.xlu0 %377
        %v380 = vsub.f32 %v315, %v318
        %v381 = vsub.f32 %v315, %v322
        %v382 = vsub.f32 %v315, %v326
        %v383 = vsub.f32 %v315, %v330
        %v384 = vsub.f32 %v315, %v334
        %v385 = vsub.f32 %v315, %v338
        %v386 = vsub.f32 %v315, %v342
        %v387 = vsub.f32 %v315, %v346
        %v388 = vsub.f32 %v315, %v350
        %v389 = vsub.f32 %v315, %v354
        %v390 = vsub.f32 %v315, %v358
        %v391 = vsub.f32 %v315, %v362
        %v392 = vsub.f32 %v315, %v366
        %v393 = vsub.f32 %v315, %v370
        %v394 = vsub.f32 %v315, %v374
        %v395 = vsub.f32 %v315, %v378
        %v396 = vand.u32 2147483647, %v296
        %v397 = vand.u32 2147483647, %v297
        %v398 = vand.u32 2147483647, %v298
        %v399 = vand.u32 2147483647, %v299
        %v400 = vand.u32 2147483647, %v300
        %v401 = vand.u32 2147483647, %v301
        %v402 = vand.u32 2147483647, %v302
        %v403 = vand.u32 2147483647, %v303
        %v404 = vand.u32 2147483647, %v304
        %v405 = vand.u32 2147483647, %v305
        %v406 = vand.u32 2147483647, %v306
        %v407 = vand.u32 2147483647, %v307
        %v408 = vand.u32 2147483647, %v308
        %v409 = vand.u32 2147483647, %v309
        %v410 = vand.u32 2147483647, %v310
        %v411 = vand.u32 2147483647, %v311
        %v412 = vsub.f32 1.0, %v396
        %v413 = vsub.f32 1.0, %v397
        %v414 = vsub.f32 1.0, %v398
        %v415 = vsub.f32 1.0, %v399
        %v416 = vsub.f32 1.0, %v400
        %v417 = vsub.f32 1.0, %v401
        %v418 = vsub.f32 1.0, %v402
        %v419 = vsub.f32 1.0, %v403
        %v420 = vsub.f32 1.0, %v404
        %v421 = vsub.f32 1.0, %v405
        %v422 = vsub.f32 1.0, %v406
        %v423 = vsub.f32 1.0, %v407
        %v424 = vsub.f32 1.0, %v408
        %v425 = vsub.f32 1.0, %v409
        %v426 = vsub.f32 1.0, %v410
        %v427 = vsub.f32 1.0, %v411
        %v428 = vmax.f32 %v412, 0.0
        %v429 = vmax.f32 %v413, 0.0
        %v430 = vmax.f32 %v414, 0.0
        %v431 = vmax.f32 %v415, 0.0
        %v432 = vmax.f32 %v416, 0.0
        %v433 = vmax.f32 %v417, 0.0
        %v434 = vmax.f32 %v418, 0.0
        %v435 = vmax.f32 %v419, 0.0
        %v436 = vmax.f32 %v420, 0.0
        %v437 = vmax.f32 %v421, 0.0
        %v438 = vmax.f32 %v422, 0.0
        %v439 = vmax.f32 %v423, 0.0
        %v440 = vmax.f32 %v424, 0.0
        %v441 = vmax.f32 %v425, 0.0
        %v442 = vmax.f32 %v426, 0.0
        %v443 = vmax.f32 %v427, 0.0
        %v444 = vand.u32 2147483647, %v380
        %v445 = vand.u32 2147483647, %v381
        %v446 = vand.u32 2147483647, %v382
        %v447 = vand.u32 2147483647, %v383
        %v448 = vand.u32 2147483647, %v384
        %v449 = vand.u32 2147483647, %v385
        %v450 = vand.u32 2147483647, %v386
        %v451 = vand.u32 2147483647, %v387
        %v452 = vand.u32 2147483647, %v388
        %v453 = vand.u32 2147483647, %v389
        %v454 = vand.u32 2147483647, %v390
        %v455 = vand.u32 2147483647, %v391
        %v456 = vand.u32 2147483647, %v392
        %v457 = vand.u32 2147483647, %v393
        %v458 = vand.u32 2147483647, %v394
        %v459 = vand.u32 2147483647, %v395
        %v460 = vsub.f32 1.0, %v444
        %v461 = vsub.f32 1.0, %v445
        %v462 = vsub.f32 1.0, %v446
        %v463 = vsub.f32 1.0, %v447
        %v464 = vsub.f32 1.0, %v448
        %v465 = vsub.f32 1.0, %v449
        %v466 = vsub.f32 1.0, %v450
        %v467 = vsub.f32 1.0, %v451
        %v468 = vsub.f32 1.0, %v452
        %v469 = vsub.f32 1.0, %v453
        %v470 = vsub.f32 1.0, %v454
        %v471 = vsub.f32 1.0, %v455
        %v472 = vsub.f32 1.0, %v456
        %v473 = vsub.f32 1.0, %v457
        %v474 = vsub.f32 1.0, %v458
        %v475 = vsub.f32 1.0, %v459
        %v476 = vmax.f32 %v460, 0.0
        %v477 = vmax.f32 %v461, 0.0
        %v478 = vmax.f32 %v462, 0.0
        %v479 = vmax.f32 %v463, 0.0
        %v480 = vmax.f32 %v464, 0.0
        %v481 = vmax.f32 %v465, 0.0
        %v482 = vmax.f32 %v466, 0.0
        %v483 = vmax.f32 %v467, 0.0
        %v484 = vmax.f32 %v468, 0.0
        %v485 = vmax.f32 %v469, 0.0
        %v486 = vmax.f32 %v470, 0.0
        %v487 = vmax.f32 %v471, 0.0
        %v488 = vmax.f32 %v472, 0.0
        %v489 = vmax.f32 %v473, 0.0
        %v490 = vmax.f32 %v474, 0.0
        %v491 = vmax.f32 %v475, 0.0
        %v492 = vmul.f32 %v428, %v476
        %v493 = vmul.f32 %v429, %v477
        %v494 = vmul.f32 %v430, %v478
        %v495 = vmul.f32 %v431, %v479
        %v496 = vmul.f32 %v432, %v480
        %v497 = vmul.f32 %v433, %v481
        %v498 = vmul.f32 %v434, %v482
        %v499 = vmul.f32 %v435, %v483
        %v500 = vmul.f32 %v436, %v484
        %v501 = vmul.f32 %v437, %v485
        %v502 = vmul.f32 %v438, %v486
        %v503 = vmul.f32 %v439, %v487
        %v504 = vmul.f32 %v440, %v488
        %v505 = vmul.f32 %v441, %v489
        %v506 = vmul.f32 %v442, %v490
        %v507 = vmul.f32 %v443, %v491
        %v508 = vld [vmem:[%s2] sm:$0xff]
        %v509 = vld [vmem:[%s1 + $0x80] sm:$0xff]
        %v510 = vld [vmem:[%s1 + $0x88] sm:$0xff]
        %v511 = vld [vmem:[%s1 + $0x90] sm:$0xff]
        %v512 = vld [vmem:[%s1 + $0x98] sm:$0xff]
        %v513 = vld [vmem:[%s1 + $0xa0] sm:$0xff]
        %v514 = vld [vmem:[%s1 + $0xa8] sm:$0xff]
        %v515 = vld [vmem:[%s1 + $0xb0] sm:$0xff]
        %v516 = vld [vmem:[%s1 + $0xb8] sm:$0xff]
        %v517 = vld [vmem:[%s1 + $0xc0] sm:$0xff]
        %v518 = vld [vmem:[%s1 + $0xc8] sm:$0xff]
        %v519 = vld [vmem:[%s1 + $0xd0] sm:$0xff]
        %v520 = vld [vmem:[%s1 + $0xd8] sm:$0xff]
        %v521 = vld [vmem:[%s1 + $0xe0] sm:$0xff]
        %v522 = vld [vmem:[%s1 + $0xe8] sm:$0xff]
        %v523 = vld [vmem:[%s1 + $0xf0] sm:$0xff]
        %v524 = vld [vmem:[%s1 + $0xf8] sm:$0xff]
        %526 = vset.pattern.permute.xlu0 0
        %527 = vperm.xlu0 %526, %v509
        %v528 = vpop.permute.xlu0 %527
        %531 = vset.pattern.permute.xlu0 0
        %532 = vperm.xlu0 %531, %v510
        %v533 = vpop.permute.xlu0 %532
        %536 = vset.pattern.permute.xlu0 0
        %537 = vperm.xlu0 %536, %v511
        %v538 = vpop.permute.xlu0 %537
        %541 = vset.pattern.permute.xlu0 0
        %542 = vperm.xlu0 %541, %v512
        %v543 = vpop.permute.xlu0 %542
        %546 = vset.pattern.permute.xlu0 0
        %547 = vperm.xlu0 %546, %v513
        %v548 = vpop.permute.xlu0 %547
        %551 = vset.pattern.permute.xlu0 0
        %552 = vperm.xlu0 %551, %v514
        %v553 = vpop.permute.xlu0 %552
        %556 = vset.pattern.permute.xlu0 0
        %557 = vperm.xlu0 %556, %v515
        %v558 = vpop.permute.xlu0 %557
        %561 = vset.pattern.permute.xlu0 0
        %562 = vperm.xlu0 %561, %v516
        %v563 = vpop.permute.xlu0 %562
        %566 = vset.pattern.permute.xlu0 0
        %567 = vperm.xlu0 %566, %v517
        %v568 = vpop.permute.xlu0 %567
        %571 = vset.pattern.permute.xlu0 0
        %572 = vperm.xlu0 %571, %v518
        %v573 = vpop.permute.xlu0 %572
        %576 = vset.pattern.permute.xlu0 0
        %577 = vperm.xlu0 %576, %v519
        %v578 = vpop.permute.xlu0 %577
        %581 = vset.pattern.permute.xlu0 0
        %582 = vperm.xlu0 %581, %v520
        %v583 = vpop.permute.xlu0 %582
        %586 = vset.pattern.permute.xlu0 0
        %587 = vperm.xlu0 %586, %v521
        %v588 = vpop.permute.xlu0 %587
        %591 = vset.pattern.permute.xlu0 0
        %592 = vperm.xlu0 %591, %v522
        %v593 = vpop.permute.xlu0 %592
        %596 = vset.pattern.permute.xlu0 0
        %597 = vperm.xlu0 %596, %v523
        %v598 = vpop.permute.xlu0 %597
        %601 = vset.pattern.permute.xlu0 0
        %602 = vperm.xlu0 %601, %v524
        %v603 = vpop.permute.xlu0 %602
        %v605 = vsub.f32 %v215, %v528
        %v606 = vsub.f32 %v215, %v533
        %v607 = vsub.f32 %v215, %v538
        %v608 = vsub.f32 %v215, %v543
        %v609 = vsub.f32 %v215, %v548
        %v610 = vsub.f32 %v215, %v553
        %v611 = vsub.f32 %v215, %v558
        %v612 = vsub.f32 %v215, %v563
        %v613 = vsub.f32 %v215, %v568
        %v614 = vsub.f32 %v215, %v573
        %v615 = vsub.f32 %v215, %v578
        %v616 = vsub.f32 %v215, %v583
        %v617 = vsub.f32 %v215, %v588
        %v618 = vsub.f32 %v215, %v593
        %v619 = vsub.f32 %v215, %v598
        %v620 = vsub.f32 %v215, %v603
        %621 = vset.pattern.permute.xlu0 1
        %622 = vperm.xlu0 %621, %v509
        %v623 = vpop.permute.xlu0 %622
        %625 = vset.pattern.permute.xlu0 1
        %626 = vperm.xlu0 %625, %v510
        %v627 = vpop.permute.xlu0 %626
        %629 = vset.pattern.permute.xlu0 1
        %630 = vperm.xlu0 %629, %v511
        %v631 = vpop.permute.xlu0 %630
        %633 = vset.pattern.permute.xlu0 1
        %634 = vperm.xlu0 %633, %v512
        %v635 = vpop.permute.xlu0 %634
        %637 = vset.pattern.permute.xlu0 1
        %638 = vperm.xlu0 %637, %v513
        %v639 = vpop.permute.xlu0 %638
        %641 = vset.pattern.permute.xlu0 1
        %642 = vperm.xlu0 %641, %v514
        %v643 = vpop.permute.xlu0 %642
        %645 = vset.pattern.permute.xlu0 1
        %646 = vperm.xlu0 %645, %v515
        %v647 = vpop.permute.xlu0 %646
        %649 = vset.pattern.permute.xlu0 1
        %650 = vperm.xlu0 %649, %v516
        %v651 = vpop.permute.xlu0 %650
        %653 = vset.pattern.permute.xlu0 1
        %654 = vperm.xlu0 %653, %v517
        %v655 = vpop.permute.xlu0 %654
        %657 = vset.pattern.permute.xlu0 1
        %658 = vperm.xlu0 %657, %v518
        %v659 = vpop.permute.xlu0 %658
        %661 = vset.pattern.permute.xlu0 1
        %662 = vperm.xlu0 %661, %v519
        %v663 = vpop.permute.xlu0 %662
        %665 = vset.pattern.permute.xlu0 1
        %666 = vperm.xlu0 %665, %v520
        %v667 = vpop.permute.xlu0 %666
        %669 = vset.pattern.permute.xlu0 1
        %670 = vperm.xlu0 %669, %v521
        %v671 = vpop.permute.xlu0 %670
        %673 = vset.pattern.permute.xlu0 1
        %674 = vperm.xlu0 %673, %v522
        %v675 = vpop.permute.xlu0 %674
        %677 = vset.pattern.permute.xlu0 1
        %678 = vperm.xlu0 %677, %v523
        %v679 = vpop.permute.xlu0 %678
        %681 = vset.pattern.permute.xlu0 1
        %682 = vperm.xlu0 %681, %v524
        %v683 = vpop.permute.xlu0 %682
        %v685 = vsub.f32 %v315, %v623
        %v686 = vsub.f32 %v315, %v627
        %v687 = vsub.f32 %v315, %v631
        %v688 = vsub.f32 %v315, %v635
        %v689 = vsub.f32 %v315, %v639
        %v690 = vsub.f32 %v315, %v643
        %v691 = vsub.f32 %v315, %v647
        %v692 = vsub.f32 %v315, %v651
        %v693 = vsub.f32 %v315, %v655
        %v694 = vsub.f32 %v315, %v659
        %v695 = vsub.f32 %v315, %v663
        %v696 = vsub.f32 %v315, %v667
        %v697 = vsub.f32 %v315, %v671
        %v698 = vsub.f32 %v315, %v675
        %v699 = vsub.f32 %v315, %v679
        %v700 = vsub.f32 %v315, %v683
        %v701 = vand.u32 2147483647, %v605
        %v702 = vand.u32 2147483647, %v606
        %v703 = vand.u32 2147483647, %v607
        %v704 = vand.u32 2147483647, %v608
        %v705 = vand.u32 2147483647, %v609
        %v706 = vand.u32 2147483647, %v610
        %v707 = vand.u32 2147483647, %v611
        %v708 = vand.u32 2147483647, %v612
        %v709 = vand.u32 2147483647, %v613
        %v710 = vand.u32 2147483647, %v614
        %v711 = vand.u32 2147483647, %v615
        %v712 = vand.u32 2147483647, %v616
        %v713 = vand.u32 2147483647, %v617
        %v714 = vand.u32 2147483647, %v618
        %v715 = vand.u32 2147483647, %v619
        %v716 = vand.u32 2147483647, %v620
        %v717 = vsub.f32 1.0, %v701
        %v718 = vsub.f32 1.0, %v702
        %v719 = vsub.f32 1.0, %v703
        %v720 = vsub.f32 1.0, %v704
        %v721 = vsub.f32 1.0, %v705
        %v722 = vsub.f32 1.0, %v706
        %v723 = vsub.f32 1.0, %v707
        %v724 = vsub.f32 1.0, %v708
        %v725 = vsub.f32 1.0, %v709
        %v726 = vsub.f32 1.0, %v710
        %v727 = vsub.f32 1.0, %v711
        %v728 = vsub.f32 1.0, %v712
        %v729 = vsub.f32 1.0, %v713
        %v730 = vsub.f32 1.0, %v714
        %v731 = vsub.f32 1.0, %v715
        %v732 = vsub.f32 1.0, %v716
        %v733 = vmax.f32 %v717, 0.0
        %v734 = vmax.f32 %v718, 0.0
        %v735 = vmax.f32 %v719, 0.0
        %v736 = vmax.f32 %v720, 0.0
        %v737 = vmax.f32 %v721, 0.0
        %v738 = vmax.f32 %v722, 0.0
        %v739 = vmax.f32 %v723, 0.0
        %v740 = vmax.f32 %v724, 0.0
        %v741 = vmax.f32 %v725, 0.0
        %v742 = vmax.f32 %v726, 0.0
        %v743 = vmax.f32 %v727, 0.0
        %v744 = vmax.f32 %v728, 0.0
        %v745 = vmax.f32 %v729, 0.0
        %v746 = vmax.f32 %v730, 0.0
        %v747 = vmax.f32 %v731, 0.0
        %v748 = vmax.f32 %v732, 0.0
        %v749 = vand.u32 2147483647, %v685
        %v750 = vand.u32 2147483647, %v686
        %v751 = vand.u32 2147483647, %v687
        %v752 = vand.u32 2147483647, %v688
        %v753 = vand.u32 2147483647, %v689
        %v754 = vand.u32 2147483647, %v690
        %v755 = vand.u32 2147483647, %v691
        %v756 = vand.u32 2147483647, %v692
        %v757 = vand.u32 2147483647, %v693
        %v758 = vand.u32 2147483647, %v694
        %v759 = vand.u32 2147483647, %v695
        %v760 = vand.u32 2147483647, %v696
        %v761 = vand.u32 2147483647, %v697
        %v762 = vand.u32 2147483647, %v698
        %v763 = vand.u32 2147483647, %v699
        %v764 = vand.u32 2147483647, %v700
        %v765 = vsub.f32 1.0, %v749
        %v766 = vsub.f32 1.0, %v750
        %v767 = vsub.f32 1.0, %v751
        %v768 = vsub.f32 1.0, %v752
        %v769 = vsub.f32 1.0, %v753
        %v770 = vsub.f32 1.0, %v754
        %v771 = vsub.f32 1.0, %v755
        %v772 = vsub.f32 1.0, %v756
        %v773 = vsub.f32 1.0, %v757
        %v774 = vsub.f32 1.0, %v758
        %v775 = vsub.f32 1.0, %v759
        %v776 = vsub.f32 1.0, %v760
        %v777 = vsub.f32 1.0, %v761
        %v778 = vsub.f32 1.0, %v762
        %v779 = vsub.f32 1.0, %v763
        %v780 = vsub.f32 1.0, %v764
        %v781 = vmax.f32 %v765, 0.0
        %v782 = vmax.f32 %v766, 0.0
        %v783 = vmax.f32 %v767, 0.0
        %v784 = vmax.f32 %v768, 0.0
        %v785 = vmax.f32 %v769, 0.0
        %v786 = vmax.f32 %v770, 0.0
        %v787 = vmax.f32 %v771, 0.0
        %v788 = vmax.f32 %v772, 0.0
        %v789 = vmax.f32 %v773, 0.0
        %v790 = vmax.f32 %v774, 0.0
        %v791 = vmax.f32 %v775, 0.0
        %v792 = vmax.f32 %v776, 0.0
        %v793 = vmax.f32 %v777, 0.0
        %v794 = vmax.f32 %v778, 0.0
        %v795 = vmax.f32 %v779, 0.0
        %v796 = vmax.f32 %v780, 0.0
        %v797 = vmul.f32 %v733, %v781
        %v798 = vmul.f32 %v734, %v782
        %v799 = vmul.f32 %v735, %v783
        %v800 = vmul.f32 %v736, %v784
        %v801 = vmul.f32 %v737, %v785
        %v802 = vmul.f32 %v738, %v786
        %v803 = vmul.f32 %v739, %v787
        %v804 = vmul.f32 %v740, %v788
        %v805 = vmul.f32 %v741, %v789
        %v806 = vmul.f32 %v742, %v790
        %v807 = vmul.f32 %v743, %v791
        %v808 = vmul.f32 %v744, %v792
        %v809 = vmul.f32 %v745, %v793
        %v810 = vmul.f32 %v746, %v794
        %v811 = vmul.f32 %v747, %v795
        %v812 = vmul.f32 %v748, %v796
        %v813 = vld [vmem:[%s2 + $0x8] sm:$0xff]
        %814 = vmatprep.subr.mxu0 0.0
        %815 = vmatpush1.msra.mxu0 %v797
        %816 = vmatprep.subr.mxu0 0.0
        %817 = vmatpush1.msra.mxu0 %v798
        %818 = vmatprep.subr.mxu0 0.0
        %819 = vmatpush1.msra.mxu0 %v799
        %820 = vmatprep.subr.mxu0 0.0
        %821 = vmatpush1.msra.mxu0 %v800
        %822 = vmatprep.subr.mxu0 0.0
        %823 = vmatpush1.msra.mxu0 %v801
        %824 = vmatprep.subr.mxu0 0.0
        %825 = vmatpush1.msra.mxu0 %v802
        %826 = vmatprep.subr.mxu0 0.0
        %827 = vmatpush1.msra.mxu0 %v803
        %828 = vmatprep.subr.mxu0 0.0
        %829 = vmatpush1.msra.mxu0 %v804
        %830 = vmatprep.subr.mxu0 0.0
        %831 = vmatpush1.msra.mxu0 %v805
        %832 = vmatprep.subr.mxu0 0.0
        %833 = vmatpush1.msra.mxu0 %v806
        %834 = vmatprep.subr.mxu0 0.0
        %835 = vmatpush1.msra.mxu0 %v807
        %836 = vmatprep.subr.mxu0 0.0
        %837 = vmatpush1.msra.mxu0 %v808
        %838 = vmatprep.subr.mxu0 0.0
        %839 = vmatpush1.msra.mxu0 %v809
        %840 = vmatprep.subr.mxu0 0.0
        %841 = vmatpush1.msra.mxu0 %v810
        %842 = vmatprep.subr.mxu0 0.0
        %843 = vmatpush1.msra.mxu0 %v811
        %844 = vmatprep.subr.mxu0 0.0
        %845 = vmatpush1.msra.mxu0 %v812
        %846 = vmatprep.subr.mxu0 0.0
        %847 = vmatpush1.msra.mxu0 0.0
        %848 = vmatprep.subr.mxu0 0.0
        %849 = vmatpush1.msra.mxu0 0.0
        %850 = vmatprep.subr.mxu0 0.0
        %851 = vmatpush1.msra.mxu0 0.0
        %852 = vmatprep.subr.mxu0 0.0
        %853 = vmatpush1.msra.mxu0 0.0
        %854 = vmatprep.subr.mxu0 0.0
        %855 = vmatpush1.msra.mxu0 0.0
        %856 = vmatprep.subr.mxu0 0.0
        %857 = vmatpush1.msra.mxu0 0.0
        %858 = vmatprep.subr.mxu0 0.0
        %859 = vmatpush1.msra.mxu0 0.0
        %860 = vmatprep.subr.mxu0 0.0
        %861 = vmatpush1.msra.mxu0 0.0
        %862 = vmatprep.subr.mxu0 0.0
        %863 = vmatpush1.msra.mxu0 0.0
        %864 = vmatprep.subr.mxu0 0.0
        %865 = vmatpush1.msra.mxu0 0.0
        %866 = vmatprep.subr.mxu0 0.0
        %867 = vmatpush1.msra.mxu0 0.0
        %868 = vmatprep.subr.mxu0 0.0
        %869 = vmatpush1.msra.mxu0 0.0
        %870 = vmatprep.subr.mxu0 0.0
        %871 = vmatpush1.msra.mxu0 0.0
        %872 = vmatprep.subr.mxu0 0.0
        %873 = vmatpush1.msra.mxu0 0.0
        %874 = vmatprep.subr.mxu0 0.0
        %875 = vmatpush1.msra.mxu0 0.0
        %876 = vmatprep.subr.mxu0 0.0
        %877 = vmatpush1.msra.mxu0 0.0
        %878 = vmatprep.mubr.f32.mxu0 0.0
        %879 = vmatmul.mubr.f32.gmra.mrb[0].mxu0 %v813
        %v880 = vpop.f32.mrb[0].mxu0
        %v881 = vadd.f32 0.0, %v880
        %v882 = vpop.f32.mrb[0].mxu0
        %883 = vdwg.mxu0
        %884 = vmatprep.subr.mxu0 0.0
        %885 = vmatpush1.msra.mxu0 %v492
        %886 = vmatprep.subr.mxu0 0.0
        %887 = vmatpush1.msra.mxu0 %v493
        %888 = vmatprep.subr.mxu0 0.0
        %889 = vmatpush1.msra.mxu0 %v494
        %890 = vmatprep.subr.mxu0 0.0
        %891 = vmatpush1.msra.mxu0 %v495
        %892 = vmatprep.subr.mxu0 0.0
        %893 = vmatpush1.msra.mxu0 %v496
        %894 = vmatprep.subr.mxu0 0.0
        %895 = vmatpush1.msra.mxu0 %v497
        %896 = vmatprep.subr.mxu0 0.0
        %897 = vmatpush1.msra.mxu0 %v498
        %898 = vmatprep.subr.mxu0 0.0
        %899 = vmatpush1.msra.mxu0 %v499
        %900 = vmatprep.subr.mxu0 0.0
        %901 = vmatpush1.msra.mxu0 %v500
        %902 = vmatprep.subr.mxu0 0.0
        %903 = vmatpush1.msra.mxu0 %v501
        %904 = vmatprep.subr.mxu0 0.0
        %905 = vmatpush1.msra.mxu0 %v502
        %906 = vmatprep.subr.mxu0 0.0
        %907 = vmatpush1.msra.mxu0 %v503
        %908 = vmatprep.subr.mxu0 0.0
        %909 = vmatpush1.msra.mxu0 %v504
        %910 = vmatprep.subr.mxu0 0.0
        %911 = vmatpush1.msra.mxu0 %v505
        %912 = vmatprep.subr.mxu0 0.0
        %913 = vmatpush1.msra.mxu0 %v506
        %914 = vmatprep.subr.mxu0 0.0
        %915 = vmatpush1.msra.mxu0 %v507
        %916 = vmatprep.subr.mxu0 0.0
        %917 = vmatpush1.msra.mxu0 0.0
        %918 = vmatprep.subr.mxu0 0.0
        %919 = vmatpush1.msra.mxu0 0.0
        %920 = vmatprep.subr.mxu0 0.0
        %921 = vmatpush1.msra.mxu0 0.0
        %922 = vmatprep.subr.mxu0 0.0
        %923 = vmatpush1.msra.mxu0 0.0
        %924 = vmatprep.subr.mxu0 0.0
        %925 = vmatpush1.msra.mxu0 0.0
        %926 = vmatprep.subr.mxu0 0.0
        %927 = vmatpush1.msra.mxu0 0.0
        %928 = vmatprep.subr.mxu0 0.0
        %929 = vmatpush1.msra.mxu0 0.0
        %930 = vmatprep.subr.mxu0 0.0
        %931 = vmatpush1.msra.mxu0 0.0
        %932 = vmatprep.subr.mxu0 0.0
        %933 = vmatpush1.msra.mxu0 0.0
        %934 = vmatprep.subr.mxu0 0.0
        %935 = vmatpush1.msra.mxu0 0.0
        %936 = vmatprep.subr.mxu0 0.0
        %937 = vmatpush1.msra.mxu0 0.0
        %938 = vmatprep.subr.mxu0 0.0
        %939 = vmatpush1.msra.mxu0 0.0
        %940 = vmatprep.subr.mxu0 0.0
        %941 = vmatpush1.msra.mxu0 0.0
        %942 = vmatprep.subr.mxu0 0.0
        %943 = vmatpush1.msra.mxu0 0.0
        %944 = vmatprep.subr.mxu0 0.0
        %945 = vmatpush1.msra.mxu0 0.0
        %946 = vmatprep.subr.mxu0 0.0
        %947 = vmatpush1.msra.mxu0 0.0
        %948 = vmatprep.mubr.f32.mxu0 0.0
        %949 = vmatmul.mubr.f32.gmra.mrb[0].mxu0 %v508
        %v950 = vpop.f32.mrb[0].mxu0
        %v951 = vadd.f32 %v881, %v950
        %v952 = vpop.f32.mrb[0].mxu0
        %953 = vdwg.mxu0
        %v954 = vmul.f32 %v194, 7.0
        %v955 = vld [vmem:[%s1 + $0x100] sm:$0xff]
        %v956 = vld [vmem:[%s1 + $0x108] sm:$0xff]
        %v957 = vld [vmem:[%s1 + $0x110] sm:$0xff]
        %v958 = vld [vmem:[%s1 + $0x118] sm:$0xff]
        %v959 = vld [vmem:[%s1 + $0x120] sm:$0xff]
        %v960 = vld [vmem:[%s1 + $0x128] sm:$0xff]
        %v961 = vld [vmem:[%s1 + $0x130] sm:$0xff]
        %v962 = vld [vmem:[%s1 + $0x138] sm:$0xff]
        %v963 = vld [vmem:[%s1 + $0x140] sm:$0xff]
        %v964 = vld [vmem:[%s1 + $0x148] sm:$0xff]
        %v965 = vld [vmem:[%s1 + $0x150] sm:$0xff]
        %v966 = vld [vmem:[%s1 + $0x158] sm:$0xff]
        %v967 = vld [vmem:[%s1 + $0x160] sm:$0xff]
        %v968 = vld [vmem:[%s1 + $0x168] sm:$0xff]
        %v969 = vld [vmem:[%s1 + $0x170] sm:$0xff]
        %v970 = vld [vmem:[%s1 + $0x178] sm:$0xff]
        %v971 = vlaneseq
        %v972 = vshrl.u32 %v971, 7
        %v973 = vsub.s32 1, %v972
        %v974 = vrot.slane %v954, %v973
        %976 = vset.pattern.permute.xlu0 0
        %977 = vperm.xlu0 %976, %v955
        %v978 = vpop.permute.xlu0 %977
        %981 = vset.pattern.permute.xlu0 0
        %982 = vperm.xlu0 %981, %v956
        %v983 = vpop.permute.xlu0 %982
        %986 = vset.pattern.permute.xlu0 0
        %987 = vperm.xlu0 %986, %v957
        %v988 = vpop.permute.xlu0 %987
        %991 = vset.pattern.permute.xlu0 0
        %992 = vperm.xlu0 %991, %v958
        %v993 = vpop.permute.xlu0 %992
        %996 = vset.pattern.permute.xlu0 0
        %997 = vperm.xlu0 %996, %v959
        %v998 = vpop.permute.xlu0 %997
        %1001 = vset.pattern.permute.xlu0 0
        %1002 = vperm.xlu0 %1001, %v960
        %v1003 = vpop.permute.xlu0 %1002
        %1006 = vset.pattern.permute.xlu0 0
        %1007 = vperm.xlu0 %1006, %v961
        %v1008 = vpop.permute.xlu0 %1007
        %1011 = vset.pattern.permute.xlu0 0
        %1012 = vperm.xlu0 %1011, %v962
        %v1013 = vpop.permute.xlu0 %1012
        %1016 = vset.pattern.permute.xlu0 0
        %1017 = vperm.xlu0 %1016, %v963
        %v1018 = vpop.permute.xlu0 %1017
        %1021 = vset.pattern.permute.xlu0 0
        %1022 = vperm.xlu0 %1021, %v964
        %v1023 = vpop.permute.xlu0 %1022
        %1026 = vset.pattern.permute.xlu0 0
        %1027 = vperm.xlu0 %1026, %v965
        %v1028 = vpop.permute.xlu0 %1027
        %1031 = vset.pattern.permute.xlu0 0
        %1032 = vperm.xlu0 %1031, %v966
        %v1033 = vpop.permute.xlu0 %1032
        %1036 = vset.pattern.permute.xlu0 0
        %1037 = vperm.xlu0 %1036, %v967
        %v1038 = vpop.permute.xlu0 %1037
        %1041 = vset.pattern.permute.xlu0 0
        %1042 = vperm.xlu0 %1041, %v968
        %v1043 = vpop.permute.xlu0 %1042
        %1046 = vset.pattern.permute.xlu0 0
        %1047 = vperm.xlu0 %1046, %v969
        %v1048 = vpop.permute.xlu0 %1047
        %1051 = vset.pattern.permute.xlu0 0
        %1052 = vperm.xlu0 %1051, %v970
        %v1053 = vpop.permute.xlu0 %1052
        %v1055 = vsub.f32 %v974, %v978
        %v1056 = vsub.f32 %v974, %v983
        %v1057 = vsub.f32 %v974, %v988
        %v1058 = vsub.f32 %v974, %v993
        %v1059 = vsub.f32 %v974, %v998
        %v1060 = vsub.f32 %v974, %v1003
        %v1061 = vsub.f32 %v974, %v1008
        %v1062 = vsub.f32 %v974, %v1013
        %v1063 = vsub.f32 %v974, %v1018
        %v1064 = vsub.f32 %v974, %v1023
        %v1065 = vsub.f32 %v974, %v1028
        %v1066 = vsub.f32 %v974, %v1033
        %v1067 = vsub.f32 %v974, %v1038
        %v1068 = vsub.f32 %v974, %v1043
        %v1069 = vsub.f32 %v974, %v1048
        %v1070 = vsub.f32 %v974, %v1053
        %v1071 = vlaneseq
        %v1072 = vshrl.u32 %v1071, 7
        %v1073 = vsub.s32 0, %v1072
        %v1074 = vrot.slane %v954, %v1073
        %1075 = vset.pattern.permute.xlu0 1
        %1076 = vperm.xlu0 %1075, %v955
        %v1077 = vpop.permute.xlu0 %1076
        %1079 = vset.pattern.permute.xlu0 1
        %1080 = vperm.xlu0 %1079, %v956
        %v1081 = vpop.permute.xlu0 %1080
        %1083 = vset.pattern.permute.xlu0 1
        %1084 = vperm.xlu0 %1083, %v957
        %v1085 = vpop.permute.xlu0 %1084
        %1087 = vset.pattern.permute.xlu0 1
        %1088 = vperm.xlu0 %1087, %v958
        %v1089 = vpop.permute.xlu0 %1088
        %1091 = vset.pattern.permute.xlu0 1
        %1092 = vperm.xlu0 %1091, %v959
        %v1093 = vpop.permute.xlu0 %1092
        %1095 = vset.pattern.permute.xlu0 1
        %1096 = vperm.xlu0 %1095, %v960
        %v1097 = vpop.permute.xlu0 %1096
        %1099 = vset.pattern.permute.xlu0 1
        %1100 = vperm.xlu0 %1099, %v961
        %v1101 = vpop.permute.xlu0 %1100
        %1103 = vset.pattern.permute.xlu0 1
        %1104 = vperm.xlu0 %1103, %v962
        %v1105 = vpop.permute.xlu0 %1104
        %1107 = vset.pattern.permute.xlu0 1
        %1108 = vperm.xlu0 %1107, %v963
        %v1109 = vpop.permute.xlu0 %1108
        %1111 = vset.pattern.permute.xlu0 1
        %1112 = vperm.xlu0 %1111, %v964
        %v1113 = vpop.permute.xlu0 %1112
        %1115 = vset.pattern.permute.xlu0 1
        %1116 = vperm.xlu0 %1115, %v965
        %v1117 = vpop.permute.xlu0 %1116
        %1119 = vset.pattern.permute.xlu0 1
        %1120 = vperm.xlu0 %1119, %v966
        %v1121 = vpop.permute.xlu0 %1120
        %1123 = vset.pattern.permute.xlu0 1
        %1124 = vperm.xlu0 %1123, %v967
        %v1125 = vpop.permute.xlu0 %1124
        %1127 = vset.pattern.permute.xlu0 1
        %1128 = vperm.xlu0 %1127, %v968
        %v1129 = vpop.permute.xlu0 %1128
        %1131 = vset.pattern.permute.xlu0 1
        %1132 = vperm.xlu0 %1131, %v969
        %v1133 = vpop.permute.xlu0 %1132
        %1135 = vset.pattern.permute.xlu0 1
        %1136 = vperm.xlu0 %1135, %v970
        %v1137 = vpop.permute.xlu0 %1136
        %v1139 = vsub.f32 %v1074, %v1077
        %v1140 = vsub.f32 %v1074, %v1081
        %v1141 = vsub.f32 %v1074, %v1085
        %v1142 = vsub.f32 %v1074, %v1089
        %v1143 = vsub.f32 %v1074, %v1093
        %v1144 = vsub.f32 %v1074, %v1097
        %v1145 = vsub.f32 %v1074, %v1101
        %v1146 = vsub.f32 %v1074, %v1105
        %v1147 = vsub.f32 %v1074, %v1109
        %v1148 = vsub.f32 %v1074, %v1113
        %v1149 = vsub.f32 %v1074, %v1117
        %v1150 = vsub.f32 %v1074, %v1121
        %v1151 = vsub.f32 %v1074, %v1125
        %v1152 = vsub.f32 %v1074, %v1129
        %v1153 = vsub.f32 %v1074, %v1133
        %v1154 = vsub.f32 %v1074, %v1137
        %v1155 = vand.u32 2147483647, %v1055
        %v1156 = vand.u32 2147483647, %v1056
        %v1157 = vand.u32 2147483647, %v1057
        %v1158 = vand.u32 2147483647, %v1058
        %v1159 = vand.u32 2147483647, %v1059
        %v1160 = vand.u32 2147483647, %v1060
        %v1161 = vand.u32 2147483647, %v1061
        %v1162 = vand.u32 2147483647, %v1062
        %v1163 = vand.u32 2147483647, %v1063
        %v1164 = vand.u32 2147483647, %v1064
        %v1165 = vand.u32 2147483647, %v1065
        %v1166 = vand.u32 2147483647, %v1066
        %v1167 = vand.u32 2147483647, %v1067
        %v1168 = vand.u32 2147483647, %v1068
        %v1169 = vand.u32 2147483647, %v1069
        %v1170 = vand.u32 2147483647, %v1070
        %v1171 = vsub.f32 1.0, %v1155
        %v1172 = vsub.f32 1.0, %v1156
        %v1173 = vsub.f32 1.0, %v1157
        %v1174 = vsub.f32 1.0, %v1158
        %v1175 = vsub.f32 1.0, %v1159
        %v1176 = vsub.f32 1.0, %v1160
        %v1177 = vsub.f32 1.0, %v1161
        %v1178 = vsub.f32 1.0, %v1162
        %v1179 = vsub.f32 1.0, %v1163
        %v1180 = vsub.f32 1.0, %v1164
        %v1181 = vsub.f32 1.0, %v1165
        %v1182 = vsub.f32 1.0, %v1166
        %v1183 = vsub.f32 1.0, %v1167
        %v1184 = vsub.f32 1.0, %v1168
        %v1185 = vsub.f32 1.0, %v1169
        %v1186 = vsub.f32 1.0, %v1170
        %v1187 = vmax.f32 %v1171, 0.0
        %v1188 = vmax.f32 %v1172, 0.0
        %v1189 = vmax.f32 %v1173, 0.0
        %v1190 = vmax.f32 %v1174, 0.0
        %v1191 = vmax.f32 %v1175, 0.0
        %v1192 = vmax.f32 %v1176, 0.0
        %v1193 = vmax.f32 %v1177, 0.0
        %v1194 = vmax.f32 %v1178, 0.0
        %v1195 = vmax.f32 %v1179, 0.0
        %v1196 = vmax.f32 %v1180, 0.0
        %v1197 = vmax.f32 %v1181, 0.0
        %v1198 = vmax.f32 %v1182, 0.0
        %v1199 = vmax.f32 %v1183, 0.0
        %v1200 = vmax.f32 %v1184, 0.0
        %v1201 = vmax.f32 %v1185, 0.0
        %v1202 = vmax.f32 %v1186, 0.0
        %v1203 = vand.u32 2147483647, %v1139
        %v1204 = vand.u32 2147483647, %v1140
        %v1205 = vand.u32 2147483647, %v1141
        %v1206 = vand.u32 2147483647, %v1142
        %v1207 = vand.u32 2147483647, %v1143
        %v1208 = vand.u32 2147483647, %v1144
        %v1209 = vand.u32 2147483647, %v1145
        %v1210 = vand.u32 2147483647, %v1146
        %v1211 = vand.u32 2147483647, %v1147
        %v1212 = vand.u32 2147483647, %v1148
        %v1213 = vand.u32 2147483647, %v1149
        %v1214 = vand.u32 2147483647, %v1150
        %v1215 = vand.u32 2147483647, %v1151
        %v1216 = vand.u32 2147483647, %v1152
        %v1217 = vand.u32 2147483647, %v1153
        %v1218 = vand.u32 2147483647, %v1154
        %v1219 = vsub.f32 1.0, %v1203
        %v1220 = vsub.f32 1.0, %v1204
        %v1221 = vsub.f32 1.0, %v1205
        %v1222 = vsub.f32 1.0, %v1206
        %v1223 = vsub.f32 1.0, %v1207
        %v1224 = vsub.f32 1.0, %v1208
        %v1225 = vsub.f32 1.0, %v1209
        %v1226 = vsub.f32 1.0, %v1210
        %v1227 = vsub.f32 1.0, %v1211
        %v1228 = vsub.f32 1.0, %v1212
        %v1229 = vsub.f32 1.0, %v1213
        %v1230 = vsub.f32 1.0, %v1214
        %v1231 = vsub.f32 1.0, %v1215
        %v1232 = vsub.f32 1.0, %v1216
        %v1233 = vsub.f32 1.0, %v1217
        %v1234 = vsub.f32 1.0, %v1218
        %v1235 = vmax.f32 %v1219, 0.0
        %v1236 = vmax.f32 %v1220, 0.0
        %v1237 = vmax.f32 %v1221, 0.0
        %v1238 = vmax.f32 %v1222, 0.0
        %v1239 = vmax.f32 %v1223, 0.0
        %v1240 = vmax.f32 %v1224, 0.0
        %v1241 = vmax.f32 %v1225, 0.0
        %v1242 = vmax.f32 %v1226, 0.0
        %v1243 = vmax.f32 %v1227, 0.0
        %v1244 = vmax.f32 %v1228, 0.0
        %v1245 = vmax.f32 %v1229, 0.0
        %v1246 = vmax.f32 %v1230, 0.0
        %v1247 = vmax.f32 %v1231, 0.0
        %v1248 = vmax.f32 %v1232, 0.0
        %v1249 = vmax.f32 %v1233, 0.0
        %v1250 = vmax.f32 %v1234, 0.0
        %v1251 = vmul.f32 %v1187, %v1235
        %v1252 = vmul.f32 %v1188, %v1236
        %v1253 = vmul.f32 %v1189, %v1237
        %v1254 = vmul.f32 %v1190, %v1238
        %v1255 = vmul.f32 %v1191, %v1239
        %v1256 = vmul.f32 %v1192, %v1240
        %v1257 = vmul.f32 %v1193, %v1241
        %v1258 = vmul.f32 %v1194, %v1242
        %v1259 = vmul.f32 %v1195, %v1243
        %v1260 = vmul.f32 %v1196, %v1244
        %v1261 = vmul.f32 %v1197, %v1245
        %v1262 = vmul.f32 %v1198, %v1246
        %v1263 = vmul.f32 %v1199, %v1247
        %v1264 = vmul.f32 %v1200, %v1248
        %v1265 = vmul.f32 %v1201, %v1249
        %v1266 = vmul.f32 %v1202, %v1250
        %v1267 = vld [vmem:[%s2 + $0x10] sm:$0xff]
        %1268 = vmatprep.subr.mxu0 0.0
        %1269 = vmatpush1.msra.mxu0 %v1251
        %1270 = vmatprep.subr.mxu0 0.0
        %1271 = vmatpush1.msra.mxu0 %v1252
        %1272 = vmatprep.subr.mxu0 0.0
        %1273 = vmatpush1.msra.mxu0 %v1253
        %1274 = vmatprep.subr.mxu0 0.0
        %1275 = vmatpush1.msra.mxu0 %v1254
        %1276 = vmatprep.subr.mxu0 0.0
        %1277 = vmatpush1.msra.mxu0 %v1255
        %1278 = vmatprep.subr.mxu0 0.0
        %1279 = vmatpush1.msra.mxu0 %v1256
        %1280 = vmatprep.subr.mxu0 0.0
        %1281 = vmatpush1.msra.mxu0 %v1257
        %1282 = vmatprep.subr.mxu0 0.0
        %1283 = vmatpush1.msra.mxu0 %v1258
        %1284 = vmatprep.subr.mxu0 0.0
        %1285 = vmatpush1.msra.mxu0 %v1259
        %1286 = vmatprep.subr.mxu0 0.0
        %1287 = vmatpush1.msra.mxu0 %v1260
        %1288 = vmatprep.subr.mxu0 0.0
        %1289 = vmatpush1.msra.mxu0 %v1261
        %1290 = vmatprep.subr.mxu0 0.0
        %1291 = vmatpush1.msra.mxu0 %v1262
        %1292 = vmatprep.subr.mxu0 0.0
        %1293 = vmatpush1.msra.mxu0 %v1263
        %1294 = vmatprep.subr.mxu0 0.0
        %1295 = vmatpush1.msra.mxu0 %v1264
        %1296 = vmatprep.subr.mxu0 0.0
        %1297 = vmatpush1.msra.mxu0 %v1265
        %1298 = vmatprep.subr.mxu0 0.0
        %1299 = vmatpush1.msra.mxu0 %v1266
        %1300 = vmatprep.subr.mxu0 0.0
        %1301 = vmatpush1.msra.mxu0 0.0
        %1302 = vmatprep.subr.mxu0 0.0
        %1303 = vmatpush1.msra.mxu0 0.0
        %1304 = vmatprep.subr.mxu0 0.0
        %1305 = vmatpush1.msra.mxu0 0.0
        %1306 = vmatprep.subr.mxu0 0.0
        %1307 = vmatpush1.msra.mxu0 0.0
        %1308 = vmatprep.subr.mxu0 0.0
        %1309 = vmatpush1.msra.mxu0 0.0
        %1310 = vmatprep.subr.mxu0 0.0
        %1311 = vmatpush1.msra.mxu0 0.0
        %1312 = vmatprep.subr.mxu0 0.0
        %1313 = vmatpush1.msra.mxu0 0.0
        %1314 = vmatprep.subr.mxu0 0.0
        %1315 = vmatpush1.msra.mxu0 0.0
        %1316 = vmatprep.subr.mxu0 0.0
        %1317 = vmatpush1.msra.mxu0 0.0
        %1318 = vmatprep.subr.mxu0 0.0
        %1319 = vmatpush1.msra.mxu0 0.0
        %1320 = vmatprep.subr.mxu0 0.0
        %1321 = vmatpush1.msra.mxu0 0.0
        %1322 = vmatprep.subr.mxu0 0.0
        %1323 = vmatpush1.msra.mxu0 0.0
        %1324 = vmatprep.subr.mxu0 0.0
        %1325 = vmatpush1.msra.mxu0 0.0
        %1326 = vmatprep.subr.mxu0 0.0
        %1327 = vmatpush1.msra.mxu0 0.0
        %1328 = vmatprep.subr.mxu0 0.0
        %1329 = vmatpush1.msra.mxu0 0.0
        %1330 = vmatprep.subr.mxu0 0.0
        %1331 = vmatpush1.msra.mxu0 0.0
        %1332 = vmatprep.mubr.f32.mxu0 0.0
        %1333 = vmatmul.mubr.f32.gmra.mrb[0].mxu0 %v1267
        %v1334 = vpop.f32.mrb[0].mxu0
        %v1335 = vadd.f32 0.0, %v1334
        %v1336 = vpop.f32.mrb[0].mxu0
        %1337 = vdwg.mxu0
        %v1338 = vadd.f32 %v951, %v1335
        %v1339 = vmul.f32 %v194, 3.0
        %v1340 = vld [vmem:[%s1 + $0x180] sm:$0xff]
        %v1341 = vld [vmem:[%s1 + $0x188] sm:$0xff]
        %v1342 = vld [vmem:[%s1 + $0x190] sm:$0xff]
        %v1343 = vld [vmem:[%s1 + $0x198] sm:$0xff]
        %v1344 = vld [vmem:[%s1 + $0x1a0] sm:$0xff]
        %v1345 = vld [vmem:[%s1 + $0x1a8] sm:$0xff]
        %v1346 = vld [vmem:[%s1 + $0x1b0] sm:$0xff]
        %v1347 = vld [vmem:[%s1 + $0x1b8] sm:$0xff]
        %v1348 = vld [vmem:[%s1 + $0x1c0] sm:$0xff]
        %v1349 = vld [vmem:[%s1 + $0x1c8] sm:$0xff]
        %v1350 = vld [vmem:[%s1 + $0x1d0] sm:$0xff]
        %v1351 = vld [vmem:[%s1 + $0x1d8] sm:$0xff]
        %v1352 = vld [vmem:[%s1 + $0x1e0] sm:$0xff]
        %v1353 = vld [vmem:[%s1 + $0x1e8] sm:$0xff]
        %v1354 = vld [vmem:[%s1 + $0x1f0] sm:$0xff]
        %v1355 = vld [vmem:[%s1 + $0x1f8] sm:$0xff]
        %v1356 = vlaneseq
        %v1357 = vshrl.u32 %v1356, 7
        %v1358 = vsub.s32 1, %v1357
        %v1359 = vrot.slane %v1339, %v1358
        %1361 = vset.pattern.permute.xlu0 0
        %1362 = vperm.xlu0 %1361, %v1340
        %v1363 = vpop.permute.xlu0 %1362
        %1366 = vset.pattern.permute.xlu0 0
        %1367 = vperm.xlu0 %1366, %v1341
        %v1368 = vpop.permute.xlu0 %1367
        %1371 = vset.pattern.permute.xlu0 0
        %1372 = vperm.xlu0 %1371, %v1342
        %v1373 = vpop.permute.xlu0 %1372
        %1376 = vset.pattern.permute.xlu0 0
        %1377 = vperm.xlu0 %1376, %v1343
        %v1378 = vpop.permute.xlu0 %1377
        %1381 = vset.pattern.permute.xlu0 0
        %1382 = vperm.xlu0 %1381, %v1344
        %v1383 = vpop.permute.xlu0 %1382
        %1386 = vset.pattern.permute.xlu0 0
        %1387 = vperm.xlu0 %1386, %v1345
        %v1388 = vpop.permute.xlu0 %1387
        %1391 = vset.pattern.permute.xlu0 0
        %1392 = vperm.xlu0 %1391, %v1346
        %v1393 = vpop.permute.xlu0 %1392
        %1396 = vset.pattern.permute.xlu0 0
        %1397 = vperm.xlu0 %1396, %v1347
        %v1398 = vpop.permute.xlu0 %1397
        %1401 = vset.pattern.permute.xlu0 0
        %1402 = vperm.xlu0 %1401, %v1348
        %v1403 = vpop.permute.xlu0 %1402
        %1406 = vset.pattern.permute.xlu0 0
        %1407 = vperm.xlu0 %1406, %v1349
        %v1408 = vpop.permute.xlu0 %1407
        %1411 = vset.pattern.permute.xlu0 0
        %1412 = vperm.xlu0 %1411, %v1350
        %v1413 = vpop.permute.xlu0 %1412
        %1416 = vset.pattern.permute.xlu0 0
        %1417 = vperm.xlu0 %1416, %v1351
        %v1418 = vpop.permute.xlu0 %1417
        %1421 = vset.pattern.permute.xlu0 0
        %1422 = vperm.xlu0 %1421, %v1352
        %v1423 = vpop.permute.xlu0 %1422
        %1426 = vset.pattern.permute.xlu0 0
        %1427 = vperm.xlu0 %1426, %v1353
        %v1428 = vpop.permute.xlu0 %1427
        %1431 = vset.pattern.permute.xlu0 0
        %1432 = vperm.xlu0 %1431, %v1354
        %v1433 = vpop.permute.xlu0 %1432
        %1436 = vset.pattern.permute.xlu0 0
        %1437 = vperm.xlu0 %1436, %v1355
        %v1438 = vpop.permute.xlu0 %1437
        %v1440 = vsub.f32 %v1359, %v1363
        %v1441 = vsub.f32 %v1359, %v1368
        %v1442 = vsub.f32 %v1359, %v1373
        %v1443 = vsub.f32 %v1359, %v1378
        %v1444 = vsub.f32 %v1359, %v1383
        %v1445 = vsub.f32 %v1359, %v1388
        %v1446 = vsub.f32 %v1359, %v1393
        %v1447 = vsub.f32 %v1359, %v1398
        %v1448 = vsub.f32 %v1359, %v1403
        %v1449 = vsub.f32 %v1359, %v1408
        %v1450 = vsub.f32 %v1359, %v1413
        %v1451 = vsub.f32 %v1359, %v1418
        %v1452 = vsub.f32 %v1359, %v1423
        %v1453 = vsub.f32 %v1359, %v1428
        %v1454 = vsub.f32 %v1359, %v1433
        %v1455 = vsub.f32 %v1359, %v1438
        %v1456 = vlaneseq
        %v1457 = vshrl.u32 %v1456, 7
        %v1458 = vsub.s32 0, %v1457
        %v1459 = vrot.slane %v1339, %v1458
        %1460 = vset.pattern.permute.xlu0 1
        %1461 = vperm.xlu0 %1460, %v1340
        %v1462 = vpop.permute.xlu0 %1461
        %1464 = vset.pattern.permute.xlu0 1
        %1465 = vperm.xlu0 %1464, %v1341
        %v1466 = vpop.permute.xlu0 %1465
        %1468 = vset.pattern.permute.xlu0 1
        %1469 = vperm.xlu0 %1468, %v1342
        %v1470 = vpop.permute.xlu0 %1469
        %1472 = vset.pattern.permute.xlu0 1
        %1473 = vperm.xlu0 %1472, %v1343
        %v1474 = vpop.permute.xlu0 %1473
        %1476 = vset.pattern.permute.xlu0 1
        %1477 = vperm.xlu0 %1476, %v1344
        %v1478 = vpop.permute.xlu0 %1477
        %1480 = vset.pattern.permute.xlu0 1
        %1481 = vperm.xlu0 %1480, %v1345
        %v1482 = vpop.permute.xlu0 %1481
        %1484 = vset.pattern.permute.xlu0 1
        %1485 = vperm.xlu0 %1484, %v1346
        %v1486 = vpop.permute.xlu0 %1485
        %1488 = vset.pattern.permute.xlu0 1
        %1489 = vperm.xlu0 %1488, %v1347
        %v1490 = vpop.permute.xlu0 %1489
        %1492 = vset.pattern.permute.xlu0 1
        %1493 = vperm.xlu0 %1492, %v1348
        %v1494 = vpop.permute.xlu0 %1493
        %1496 = vset.pattern.permute.xlu0 1
        %1497 = vperm.xlu0 %1496, %v1349
        %v1498 = vpop.permute.xlu0 %1497
        %1500 = vset.pattern.permute.xlu0 1
        %1501 = vperm.xlu0 %1500, %v1350
        %v1502 = vpop.permute.xlu0 %1501
        %1504 = vset.pattern.permute.xlu0 1
        %1505 = vperm.xlu0 %1504, %v1351
        %v1506 = vpop.permute.xlu0 %1505
        %1508 = vset.pattern.permute.xlu0 1
        %1509 = vperm.xlu0 %1508, %v1352
        %v1510 = vpop.permute.xlu0 %1509
        %1512 = vset.pattern.permute.xlu0 1
        %1513 = vperm.xlu0 %1512, %v1353
        %v1514 = vpop.permute.xlu0 %1513
        %1516 = vset.pattern.permute.xlu0 1
        %1517 = vperm.xlu0 %1516, %v1354
        %v1518 = vpop.permute.xlu0 %1517
        %1520 = vset.pattern.permute.xlu0 1
        %1521 = vperm.xlu0 %1520, %v1355
        %v1522 = vpop.permute.xlu0 %1521
        %v1524 = vsub.f32 %v1459, %v1462
        %v1525 = vsub.f32 %v1459, %v1466
        %v1526 = vsub.f32 %v1459, %v1470
        %v1527 = vsub.f32 %v1459, %v1474
        %v1528 = vsub.f32 %v1459, %v1478
        %v1529 = vsub.f32 %v1459, %v1482
        %v1530 = vsub.f32 %v1459, %v1486
        %v1531 = vsub.f32 %v1459, %v1490
        %v1532 = vsub.f32 %v1459, %v1494
        %v1533 = vsub.f32 %v1459, %v1498
        %v1534 = vsub.f32 %v1459, %v1502
        %v1535 = vsub.f32 %v1459, %v1506
        %v1536 = vsub.f32 %v1459, %v1510
        %v1537 = vsub.f32 %v1459, %v1514
        %v1538 = vsub.f32 %v1459, %v1518
        %v1539 = vsub.f32 %v1459, %v1522
        %v1540 = vand.u32 2147483647, %v1440
        %v1541 = vand.u32 2147483647, %v1441
        %v1542 = vand.u32 2147483647, %v1442
        %v1543 = vand.u32 2147483647, %v1443
        %v1544 = vand.u32 2147483647, %v1444
        %v1545 = vand.u32 2147483647, %v1445
        %v1546 = vand.u32 2147483647, %v1446
        %v1547 = vand.u32 2147483647, %v1447
        %v1548 = vand.u32 2147483647, %v1448
        %v1549 = vand.u32 2147483647, %v1449
        %v1550 = vand.u32 2147483647, %v1450
        %v1551 = vand.u32 2147483647, %v1451
        %v1552 = vand.u32 2147483647, %v1452
        %v1553 = vand.u32 2147483647, %v1453
        %v1554 = vand.u32 2147483647, %v1454
        %v1555 = vand.u32 2147483647, %v1455
        %v1556 = vsub.f32 1.0, %v1540
        %v1557 = vsub.f32 1.0, %v1541
        %v1558 = vsub.f32 1.0, %v1542
        %v1559 = vsub.f32 1.0, %v1543
        %v1560 = vsub.f32 1.0, %v1544
        %v1561 = vsub.f32 1.0, %v1545
        %v1562 = vsub.f32 1.0, %v1546
        %v1563 = vsub.f32 1.0, %v1547
        %v1564 = vsub.f32 1.0, %v1548
        %v1565 = vsub.f32 1.0, %v1549
        %v1566 = vsub.f32 1.0, %v1550
        %v1567 = vsub.f32 1.0, %v1551
        %v1568 = vsub.f32 1.0, %v1552
        %v1569 = vsub.f32 1.0, %v1553
        %v1570 = vsub.f32 1.0, %v1554
        %v1571 = vsub.f32 1.0, %v1555
        %v1572 = vmax.f32 %v1556, 0.0
        %v1573 = vmax.f32 %v1557, 0.0
        %v1574 = vmax.f32 %v1558, 0.0
        %v1575 = vmax.f32 %v1559, 0.0
        %v1576 = vmax.f32 %v1560, 0.0
        %v1577 = vmax.f32 %v1561, 0.0
        %v1578 = vmax.f32 %v1562, 0.0
        %v1579 = vmax.f32 %v1563, 0.0
        %v1580 = vmax.f32 %v1564, 0.0
        %v1581 = vmax.f32 %v1565, 0.0
        %v1582 = vmax.f32 %v1566, 0.0
        %v1583 = vmax.f32 %v1567, 0.0
        %v1584 = vmax.f32 %v1568, 0.0
        %v1585 = vmax.f32 %v1569, 0.0
        %v1586 = vmax.f32 %v1570, 0.0
        %v1587 = vmax.f32 %v1571, 0.0
        %v1588 = vand.u32 2147483647, %v1524
        %v1589 = vand.u32 2147483647, %v1525
        %v1590 = vand.u32 2147483647, %v1526
        %v1591 = vand.u32 2147483647, %v1527
        %v1592 = vand.u32 2147483647, %v1528
        %v1593 = vand.u32 2147483647, %v1529
        %v1594 = vand.u32 2147483647, %v1530
        %v1595 = vand.u32 2147483647, %v1531
        %v1596 = vand.u32 2147483647, %v1532
        %v1597 = vand.u32 2147483647, %v1533
        %v1598 = vand.u32 2147483647, %v1534
        %v1599 = vand.u32 2147483647, %v1535
        %v1600 = vand.u32 2147483647, %v1536
        %v1601 = vand.u32 2147483647, %v1537
        %v1602 = vand.u32 2147483647, %v1538
        %v1603 = vand.u32 2147483647, %v1539
        %v1604 = vsub.f32 1.0, %v1588
        %v1605 = vsub.f32 1.0, %v1589
        %v1606 = vsub.f32 1.0, %v1590
        %v1607 = vsub.f32 1.0, %v1591
        %v1608 = vsub.f32 1.0, %v1592
        %v1609 = vsub.f32 1.0, %v1593
        %v1610 = vsub.f32 1.0, %v1594
        %v1611 = vsub.f32 1.0, %v1595
        %v1612 = vsub.f32 1.0, %v1596
        %v1613 = vsub.f32 1.0, %v1597
        %v1614 = vsub.f32 1.0, %v1598
        %v1615 = vsub.f32 1.0, %v1599
        %v1616 = vsub.f32 1.0, %v1600
        %v1617 = vsub.f32 1.0, %v1601
        %v1618 = vsub.f32 1.0, %v1602
        %v1619 = vsub.f32 1.0, %v1603
        %v1620 = vmax.f32 %v1604, 0.0
        %v1621 = vmax.f32 %v1605, 0.0
        %v1622 = vmax.f32 %v1606, 0.0
        %v1623 = vmax.f32 %v1607, 0.0
        %v1624 = vmax.f32 %v1608, 0.0
        %v1625 = vmax.f32 %v1609, 0.0
        %v1626 = vmax.f32 %v1610, 0.0
        %v1627 = vmax.f32 %v1611, 0.0
        %v1628 = vmax.f32 %v1612, 0.0
        %v1629 = vmax.f32 %v1613, 0.0
        %v1630 = vmax.f32 %v1614, 0.0
        %v1631 = vmax.f32 %v1615, 0.0
        %v1632 = vmax.f32 %v1616, 0.0
        %v1633 = vmax.f32 %v1617, 0.0
        %v1634 = vmax.f32 %v1618, 0.0
        %v1635 = vmax.f32 %v1619, 0.0
        %v1636 = vmul.f32 %v1572, %v1620
        %v1637 = vmul.f32 %v1573, %v1621
        %v1638 = vmul.f32 %v1574, %v1622
        %v1639 = vmul.f32 %v1575, %v1623
        %v1640 = vmul.f32 %v1576, %v1624
        %v1641 = vmul.f32 %v1577, %v1625
        %v1642 = vmul.f32 %v1578, %v1626
        %v1643 = vmul.f32 %v1579, %v1627
        %v1644 = vmul.f32 %v1580, %v1628
        %v1645 = vmul.f32 %v1581, %v1629
        %v1646 = vmul.f32 %v1582, %v1630
        %v1647 = vmul.f32 %v1583, %v1631
        %v1648 = vmul.f32 %v1584, %v1632
        %v1649 = vmul.f32 %v1585, %v1633
        %v1650 = vmul.f32 %v1586, %v1634
        %v1651 = vmul.f32 %v1587, %v1635
        %v1652 = vld [vmem:[%s2 + $0x18] sm:$0xff]
        %1653 = vmatprep.subr.mxu0 0.0
        %1654 = vmatpush1.msra.mxu0 %v1636
        %1655 = vmatprep.subr.mxu0 0.0
        %1656 = vmatpush1.msra.mxu0 %v1637
        %1657 = vmatprep.subr.mxu0 0.0
        %1658 = vmatpush1.msra.mxu0 %v1638
        %1659 = vmatprep.subr.mxu0 0.0
        %1660 = vmatpush1.msra.mxu0 %v1639
        %1661 = vmatprep.subr.mxu0 0.0
        %1662 = vmatpush1.msra.mxu0 %v1640
        %1663 = vmatprep.subr.mxu0 0.0
        %1664 = vmatpush1.msra.mxu0 %v1641
        %1665 = vmatprep.subr.mxu0 0.0
        %1666 = vmatpush1.msra.mxu0 %v1642
        %1667 = vmatprep.subr.mxu0 0.0
        %1668 = vmatpush1.msra.mxu0 %v1643
        %1669 = vmatprep.subr.mxu0 0.0
        %1670 = vmatpush1.msra.mxu0 %v1644
        %1671 = vmatprep.subr.mxu0 0.0
        %1672 = vmatpush1.msra.mxu0 %v1645
        %1673 = vmatprep.subr.mxu0 0.0
        %1674 = vmatpush1.msra.mxu0 %v1646
        %1675 = vmatprep.subr.mxu0 0.0
        %1676 = vmatpush1.msra.mxu0 %v1647
        %1677 = vmatprep.subr.mxu0 0.0
        %1678 = vmatpush1.msra.mxu0 %v1648
        %1679 = vmatprep.subr.mxu0 0.0
        %1680 = vmatpush1.msra.mxu0 %v1649
        %1681 = vmatprep.subr.mxu0 0.0
        %1682 = vmatpush1.msra.mxu0 %v1650
        %1683 = vmatprep.subr.mxu0 0.0
        %1684 = vmatpush1.msra.mxu0 %v1651
        %1685 = vmatprep.subr.mxu0 0.0
        %1686 = vmatpush1.msra.mxu0 0.0
        %1687 = vmatprep.subr.mxu0 0.0
        %1688 = vmatpush1.msra.mxu0 0.0
        %1689 = vmatprep.subr.mxu0 0.0
        %1690 = vmatpush1.msra.mxu0 0.0
        %1691 = vmatprep.subr.mxu0 0.0
        %1692 = vmatpush1.msra.mxu0 0.0
        %1693 = vmatprep.subr.mxu0 0.0
        %1694 = vmatpush1.msra.mxu0 0.0
        %1695 = vmatprep.subr.mxu0 0.0
        %1696 = vmatpush1.msra.mxu0 0.0
        %1697 = vmatprep.subr.mxu0 0.0
        %1698 = vmatpush1.msra.mxu0 0.0
        %1699 = vmatprep.subr.mxu0 0.0
        %1700 = vmatpush1.msra.mxu0 0.0
        %1701 = vmatprep.subr.mxu0 0.0
        %1702 = vmatpush1.msra.mxu0 0.0
        %1703 = vmatprep.subr.mxu0 0.0
        %1704 = vmatpush1.msra.mxu0 0.0
        %1705 = vmatprep.subr.mxu0 0.0
        %1706 = vmatpush1.msra.mxu0 0.0
        %1707 = vmatprep.subr.mxu0 0.0
        %1708 = vmatpush1.msra.mxu0 0.0
        %1709 = vmatprep.subr.mxu0 0.0
        %1710 = vmatpush1.msra.mxu0 0.0
        %1711 = vmatprep.subr.mxu0 0.0
        %1712 = vmatpush1.msra.mxu0 0.0
        %1713 = vmatprep.subr.mxu0 0.0
        %1714 = vmatpush1.msra.mxu0 0.0
        %1715 = vmatprep.subr.mxu0 0.0
        %1716 = vmatpush1.msra.mxu0 0.0
        %1717 = vmatprep.mubr.f32.mxu0 0.0
        %1718 = vmatmul.mubr.f32.gmra.mrb[0].mxu0 %v1652
        %v1719 = vpop.f32.mrb[0].mxu0
        %v1720 = vadd.f32 0.0, %v1719
        %v1721 = vpop.f32.mrb[0].mxu0
        %1722 = vdwg.mxu0
        %v1723 = vadd.f32 %v1338, %v1720
        %v1724 = vld [vmem:[%s1 + $0x200] sm:$0xff]
        %v1725 = vld [vmem:[%s1 + $0x208] sm:$0xff]
        %v1726 = vld [vmem:[%s1 + $0x210] sm:$0xff]
        %v1727 = vld [vmem:[%s1 + $0x218] sm:$0xff]
        %v1728 = vld [vmem:[%s1 + $0x220] sm:$0xff]
        %v1729 = vld [vmem:[%s1 + $0x228] sm:$0xff]
        %v1730 = vld [vmem:[%s1 + $0x230] sm:$0xff]
        %v1731 = vld [vmem:[%s1 + $0x238] sm:$0xff]
        %v1732 = vld [vmem:[%s1 + $0x240] sm:$0xff]
        %v1733 = vld [vmem:[%s1 + $0x248] sm:$0xff]
        %v1734 = vld [vmem:[%s1 + $0x250] sm:$0xff]
        %v1735 = vld [vmem:[%s1 + $0x258] sm:$0xff]
        %v1736 = vld [vmem:[%s1 + $0x260] sm:$0xff]
        %v1737 = vld [vmem:[%s1 + $0x268] sm:$0xff]
        %v1738 = vld [vmem:[%s1 + $0x270] sm:$0xff]
        %v1739 = vld [vmem:[%s1 + $0x278] sm:$0xff]
        %v1740 = vlaneseq
        %v1741 = vshrl.u32 %v1740, 7
        %v1742 = vsub.s32 1, %v1741
        %v1743 = vrot.slane %v194, %v1742
        %1745 = vset.pattern.permute.xlu0 0
        %1746 = vperm.xlu0 %1745, %v1724
        %v1747 = vpop.permute.xlu0 %1746
        %1750 = vset.pattern.permute.xlu0 0
        %1751 = vperm.xlu0 %1750, %v1725
        %v1752 = vpop.permute.xlu0 %1751
        %1755 = vset.pattern.permute.xlu0 0
        %1756 = vperm.xlu0 %1755, %v1726
        %v1757 = vpop.permute.xlu0 %1756
        %1760 = vset.pattern.permute.xlu0 0
        %1761 = vperm.xlu0 %1760, %v1727
        %v1762 = vpop.permute.xlu0 %1761
        %1765 = vset.pattern.permute.xlu0 0
        %1766 = vperm.xlu0 %1765, %v1728
        %v1767 = vpop.permute.xlu0 %1766
        %1770 = vset.pattern.permute.xlu0 0
        %1771 = vperm.xlu0 %1770, %v1729
        %v1772 = vpop.permute.xlu0 %1771
        %1775 = vset.pattern.permute.xlu0 0
        %1776 = vperm.xlu0 %1775, %v1730
        %v1777 = vpop.permute.xlu0 %1776
        %1780 = vset.pattern.permute.xlu0 0
        %1781 = vperm.xlu0 %1780, %v1731
        %v1782 = vpop.permute.xlu0 %1781
        %1785 = vset.pattern.permute.xlu0 0
        %1786 = vperm.xlu0 %1785, %v1732
        %v1787 = vpop.permute.xlu0 %1786
        %1790 = vset.pattern.permute.xlu0 0
        %1791 = vperm.xlu0 %1790, %v1733
        %v1792 = vpop.permute.xlu0 %1791
        %1795 = vset.pattern.permute.xlu0 0
        %1796 = vperm.xlu0 %1795, %v1734
        %v1797 = vpop.permute.xlu0 %1796
        %1800 = vset.pattern.permute.xlu0 0
        %1801 = vperm.xlu0 %1800, %v1735
        %v1802 = vpop.permute.xlu0 %1801
        %1805 = vset.pattern.permute.xlu0 0
        %1806 = vperm.xlu0 %1805, %v1736
        %v1807 = vpop.permute.xlu0 %1806
        %1810 = vset.pattern.permute.xlu0 0
        %1811 = vperm.xlu0 %1810, %v1737
        %v1812 = vpop.permute.xlu0 %1811
        %1815 = vset.pattern.permute.xlu0 0
        %1816 = vperm.xlu0 %1815, %v1738
        %v1817 = vpop.permute.xlu0 %1816
        %1820 = vset.pattern.permute.xlu0 0
        %1821 = vperm.xlu0 %1820, %v1739
        %v1822 = vpop.permute.xlu0 %1821
        %v1824 = vsub.f32 %v1743, %v1747
        %v1825 = vsub.f32 %v1743, %v1752
        %v1826 = vsub.f32 %v1743, %v1757
        %v1827 = vsub.f32 %v1743, %v1762
        %v1828 = vsub.f32 %v1743, %v1767
        %v1829 = vsub.f32 %v1743, %v1772
        %v1830 = vsub.f32 %v1743, %v1777
        %v1831 = vsub.f32 %v1743, %v1782
        %v1832 = vsub.f32 %v1743, %v1787
        %v1833 = vsub.f32 %v1743, %v1792
        %v1834 = vsub.f32 %v1743, %v1797
        %v1835 = vsub.f32 %v1743, %v1802
        %v1836 = vsub.f32 %v1743, %v1807
        %v1837 = vsub.f32 %v1743, %v1812
        %v1838 = vsub.f32 %v1743, %v1817
        %v1839 = vsub.f32 %v1743, %v1822
        %v1840 = vlaneseq
        %v1841 = vshrl.u32 %v1840, 7
        %v1842 = vsub.s32 0, %v1841
        %v1843 = vrot.slane %v194, %v1842
        %1844 = vset.pattern.permute.xlu0 1
        %1845 = vperm.xlu0 %1844, %v1724
        %v1846 = vpop.permute.xlu0 %1845
        %1848 = vset.pattern.permute.xlu0 1
        %1849 = vperm.xlu0 %1848, %v1725
        %v1850 = vpop.permute.xlu0 %1849
        %1852 = vset.pattern.permute.xlu0 1
        %1853 = vperm.xlu0 %1852, %v1726
        %v1854 = vpop.permute.xlu0 %1853
        %1856 = vset.pattern.permute.xlu0 1
        %1857 = vperm.xlu0 %1856, %v1727
        %v1858 = vpop.permute.xlu0 %1857
        %1860 = vset.pattern.permute.xlu0 1
        %1861 = vperm.xlu0 %1860, %v1728
        %v1862 = vpop.permute.xlu0 %1861
        %1864 = vset.pattern.permute.xlu0 1
        %1865 = vperm.xlu0 %1864, %v1729
        %v1866 = vpop.permute.xlu0 %1865
        %1868 = vset.pattern.permute.xlu0 1
        %1869 = vperm.xlu0 %1868, %v1730
        %v1870 = vpop.permute.xlu0 %1869
        %1872 = vset.pattern.permute.xlu0 1
        %1873 = vperm.xlu0 %1872, %v1731
        %v1874 = vpop.permute.xlu0 %1873
        %1876 = vset.pattern.permute.xlu0 1
        %1877 = vperm.xlu0 %1876, %v1732
        %v1878 = vpop.permute.xlu0 %1877
        %1880 = vset.pattern.permute.xlu0 1
        %1881 = vperm.xlu0 %1880, %v1733
        %v1882 = vpop.permute.xlu0 %1881
        %1884 = vset.pattern.permute.xlu0 1
        %1885 = vperm.xlu0 %1884, %v1734
        %v1886 = vpop.permute.xlu0 %1885
        %1888 = vset.pattern.permute.xlu0 1
        %1889 = vperm.xlu0 %1888, %v1735
        %v1890 = vpop.permute.xlu0 %1889
        %1892 = vset.pattern.permute.xlu0 1
        %1893 = vperm.xlu0 %1892, %v1736
        %v1894 = vpop.permute.xlu0 %1893
        %1896 = vset.pattern.permute.xlu0 1
        %1897 = vperm.xlu0 %1896, %v1737
        %v1898 = vpop.permute.xlu0 %1897
        %1900 = vset.pattern.permute.xlu0 1
        %1901 = vperm.xlu0 %1900, %v1738
        %v1902 = vpop.permute.xlu0 %1901
        %1904 = vset.pattern.permute.xlu0 1
        %1905 = vperm.xlu0 %1904, %v1739
        %v1906 = vpop.permute.xlu0 %1905
        %v1908 = vsub.f32 %v1843, %v1846
        %v1909 = vsub.f32 %v1843, %v1850
        %v1910 = vsub.f32 %v1843, %v1854
        %v1911 = vsub.f32 %v1843, %v1858
        %v1912 = vsub.f32 %v1843, %v1862
        %v1913 = vsub.f32 %v1843, %v1866
        %v1914 = vsub.f32 %v1843, %v1870
        %v1915 = vsub.f32 %v1843, %v1874
        %v1916 = vsub.f32 %v1843, %v1878
        %v1917 = vsub.f32 %v1843, %v1882
        %v1918 = vsub.f32 %v1843, %v1886
        %v1919 = vsub.f32 %v1843, %v1890
        %v1920 = vsub.f32 %v1843, %v1894
        %v1921 = vsub.f32 %v1843, %v1898
        %v1922 = vsub.f32 %v1843, %v1902
        %v1923 = vsub.f32 %v1843, %v1906
        %v1924 = vand.u32 2147483647, %v1824
        %v1925 = vand.u32 2147483647, %v1825
        %v1926 = vand.u32 2147483647, %v1826
        %v1927 = vand.u32 2147483647, %v1827
        %v1928 = vand.u32 2147483647, %v1828
        %v1929 = vand.u32 2147483647, %v1829
        %v1930 = vand.u32 2147483647, %v1830
        %v1931 = vand.u32 2147483647, %v1831
        %v1932 = vand.u32 2147483647, %v1832
        %v1933 = vand.u32 2147483647, %v1833
        %v1934 = vand.u32 2147483647, %v1834
        %v1935 = vand.u32 2147483647, %v1835
        %v1936 = vand.u32 2147483647, %v1836
        %v1937 = vand.u32 2147483647, %v1837
        %v1938 = vand.u32 2147483647, %v1838
        %v1939 = vand.u32 2147483647, %v1839
        %v1940 = vsub.f32 1.0, %v1924
        %v1941 = vsub.f32 1.0, %v1925
        %v1942 = vsub.f32 1.0, %v1926
        %v1943 = vsub.f32 1.0, %v1927
        %v1944 = vsub.f32 1.0, %v1928
        %v1945 = vsub.f32 1.0, %v1929
        %v1946 = vsub.f32 1.0, %v1930
        %v1947 = vsub.f32 1.0, %v1931
        %v1948 = vsub.f32 1.0, %v1932
        %v1949 = vsub.f32 1.0, %v1933
        %v1950 = vsub.f32 1.0, %v1934
        %v1951 = vsub.f32 1.0, %v1935
        %v1952 = vsub.f32 1.0, %v1936
        %v1953 = vsub.f32 1.0, %v1937
        %v1954 = vsub.f32 1.0, %v1938
        %v1955 = vsub.f32 1.0, %v1939
        %v1956 = vmax.f32 %v1940, 0.0
        %v1957 = vmax.f32 %v1941, 0.0
        %v1958 = vmax.f32 %v1942, 0.0
        %v1959 = vmax.f32 %v1943, 0.0
        %v1960 = vmax.f32 %v1944, 0.0
        %v1961 = vmax.f32 %v1945, 0.0
        %v1962 = vmax.f32 %v1946, 0.0
        %v1963 = vmax.f32 %v1947, 0.0
        %v1964 = vmax.f32 %v1948, 0.0
        %v1965 = vmax.f32 %v1949, 0.0
        %v1966 = vmax.f32 %v1950, 0.0
        %v1967 = vmax.f32 %v1951, 0.0
        %v1968 = vmax.f32 %v1952, 0.0
        %v1969 = vmax.f32 %v1953, 0.0
        %v1970 = vmax.f32 %v1954, 0.0
        %v1971 = vmax.f32 %v1955, 0.0
        %v1972 = vand.u32 2147483647, %v1908
        %v1973 = vand.u32 2147483647, %v1909
        %v1974 = vand.u32 2147483647, %v1910
        %v1975 = vand.u32 2147483647, %v1911
        %v1976 = vand.u32 2147483647, %v1912
        %v1977 = vand.u32 2147483647, %v1913
        %v1978 = vand.u32 2147483647, %v1914
        %v1979 = vand.u32 2147483647, %v1915
        %v1980 = vand.u32 2147483647, %v1916
        %v1981 = vand.u32 2147483647, %v1917
        %v1982 = vand.u32 2147483647, %v1918
        %v1983 = vand.u32 2147483647, %v1919
        %v1984 = vand.u32 2147483647, %v1920
        %v1985 = vand.u32 2147483647, %v1921
        %v1986 = vand.u32 2147483647, %v1922
        %v1987 = vand.u32 2147483647, %v1923
        %v1988 = vsub.f32 1.0, %v1972
        %v1989 = vsub.f32 1.0, %v1973
        %v1990 = vsub.f32 1.0, %v1974
        %v1991 = vsub.f32 1.0, %v1975
        %v1992 = vsub.f32 1.0, %v1976
        %v1993 = vsub.f32 1.0, %v1977
        %v1994 = vsub.f32 1.0, %v1978
        %v1995 = vsub.f32 1.0, %v1979
        %v1996 = vsub.f32 1.0, %v1980
        %v1997 = vsub.f32 1.0, %v1981
        %v1998 = vsub.f32 1.0, %v1982
        %v1999 = vsub.f32 1.0, %v1983
        %v2000 = vsub.f32 1.0, %v1984
        %v2001 = vsub.f32 1.0, %v1985
        %v2002 = vsub.f32 1.0, %v1986
        %v2003 = vsub.f32 1.0, %v1987
        %v2004 = vmax.f32 %v1988, 0.0
        %v2005 = vmax.f32 %v1989, 0.0
        %v2006 = vmax.f32 %v1990, 0.0
        %v2007 = vmax.f32 %v1991, 0.0
        %v2008 = vmax.f32 %v1992, 0.0
        %v2009 = vmax.f32 %v1993, 0.0
        %v2010 = vmax.f32 %v1994, 0.0
        %v2011 = vmax.f32 %v1995, 0.0
        %v2012 = vmax.f32 %v1996, 0.0
        %v2013 = vmax.f32 %v1997, 0.0
        %v2014 = vmax.f32 %v1998, 0.0
        %v2015 = vmax.f32 %v1999, 0.0
        %v2016 = vmax.f32 %v2000, 0.0
        %v2017 = vmax.f32 %v2001, 0.0
        %v2018 = vmax.f32 %v2002, 0.0
        %v2019 = vmax.f32 %v2003, 0.0
        %v2020 = vmul.f32 %v1956, %v2004
        %v2021 = vmul.f32 %v1957, %v2005
        %v2022 = vmul.f32 %v1958, %v2006
        %v2023 = vmul.f32 %v1959, %v2007
        %v2024 = vmul.f32 %v1960, %v2008
        %v2025 = vmul.f32 %v1961, %v2009
        %v2026 = vmul.f32 %v1962, %v2010
        %v2027 = vmul.f32 %v1963, %v2011
        %v2028 = vmul.f32 %v1964, %v2012
        %v2029 = vmul.f32 %v1965, %v2013
        %v2030 = vmul.f32 %v1966, %v2014
        %v2031 = vmul.f32 %v1967, %v2015
        %v2032 = vmul.f32 %v1968, %v2016
        %v2033 = vmul.f32 %v1969, %v2017
        %v2034 = vmul.f32 %v1970, %v2018
        %v2035 = vmul.f32 %v1971, %v2019
        %v2036 = vld [vmem:[%s2 + $0x20] sm:$0xff]
        %2037 = vmatprep.subr.mxu0 0.0
        %2038 = vmatpush1.msra.mxu0 %v2020
        %2039 = vmatprep.subr.mxu0 0.0
        %2040 = vmatpush1.msra.mxu0 %v2021
        %2041 = vmatprep.subr.mxu0 0.0
        %2042 = vmatpush1.msra.mxu0 %v2022
        %2043 = vmatprep.subr.mxu0 0.0
        %2044 = vmatpush1.msra.mxu0 %v2023
        %2045 = vmatprep.subr.mxu0 0.0
        %2046 = vmatpush1.msra.mxu0 %v2024
        %2047 = vmatprep.subr.mxu0 0.0
        %2048 = vmatpush1.msra.mxu0 %v2025
        %2049 = vmatprep.subr.mxu0 0.0
        %2050 = vmatpush1.msra.mxu0 %v2026
        %2051 = vmatprep.subr.mxu0 0.0
        %2052 = vmatpush1.msra.mxu0 %v2027
        %2053 = vmatprep.subr.mxu0 0.0
        %2054 = vmatpush1.msra.mxu0 %v2028
        %2055 = vmatprep.subr.mxu0 0.0
        %2056 = vmatpush1.msra.mxu0 %v2029
        %2057 = vmatprep.subr.mxu0 0.0
        %2058 = vmatpush1.msra.mxu0 %v2030
        %2059 = vmatprep.subr.mxu0 0.0
        %2060 = vmatpush1.msra.mxu0 %v2031
        %2061 = vmatprep.subr.mxu0 0.0
        %2062 = vmatpush1.msra.mxu0 %v2032
        %2063 = vmatprep.subr.mxu0 0.0
        %2064 = vmatpush1.msra.mxu0 %v2033
        %2065 = vmatprep.subr.mxu0 0.0
        %2066 = vmatpush1.msra.mxu0 %v2034
        %2067 = vmatprep.subr.mxu0 0.0
        %2068 = vmatpush1.msra.mxu0 %v2035
        %2069 = vmatprep.subr.mxu0 0.0
        %2070 = vmatpush1.msra.mxu0 0.0
        %2071 = vmatprep.subr.mxu0 0.0
        %2072 = vmatpush1.msra.mxu0 0.0
        %2073 = vmatprep.subr.mxu0 0.0
        %2074 = vmatpush1.msra.mxu0 0.0
        %2075 = vmatprep.subr.mxu0 0.0
        %2076 = vmatpush1.msra.mxu0 0.0
        %2077 = vmatprep.subr.mxu0 0.0
        %2078 = vmatpush1.msra.mxu0 0.0
        %2079 = vmatprep.subr.mxu0 0.0
        %2080 = vmatpush1.msra.mxu0 0.0
        %2081 = vmatprep.subr.mxu0 0.0
        %2082 = vmatpush1.msra.mxu0 0.0
        %2083 = vmatprep.subr.mxu0 0.0
        %2084 = vmatpush1.msra.mxu0 0.0
        %2085 = vmatprep.subr.mxu0 0.0
        %2086 = vmatpush1.msra.mxu0 0.0
        %2087 = vmatprep.subr.mxu0 0.0
        %2088 = vmatpush1.msra.mxu0 0.0
        %2089 = vmatprep.subr.mxu0 0.0
        %2090 = vmatpush1.msra.mxu0 0.0
        %2091 = vmatprep.subr.mxu0 0.0
        %2092 = vmatpush1.msra.mxu0 0.0
        %2093 = vmatprep.subr.mxu0 0.0
        %2094 = vmatpush1.msra.mxu0 0.0
        %2095 = vmatprep.subr.mxu0 0.0
        %2096 = vmatpush1.msra.mxu0 0.0
        %2097 = vmatprep.subr.mxu0 0.0
        %2098 = vmatpush1.msra.mxu0 0.0
        %2099 = vmatprep.subr.mxu0 0.0
        %2100 = vmatpush1.msra.mxu0 0.0
        %2101 = vmatprep.mubr.f32.mxu0 0.0
        %2102 = vmatmul.mubr.f32.gmra.mrb[0].mxu0 %v2036
        %v2103 = vpop.f32.mrb[0].mxu0
        %v2104 = vadd.f32 0.0, %v2103
        %v2105 = vpop.f32.mrb[0].mxu0
        %2106 = vdwg.mxu0
        %v2107 = vadd.f32 %v1723, %v2104
        %v2108 = vlaneseq
        %v2109 = vshrl.u32 %v2108, 7
        %v2110 = vsub.s32 2, %v2109
        %v2111 = vrot.slane %v194, %v2110
        %v2112 = vmul.f32 %v2107, %v2111
        %2113 = vst [vmem:[%s185] sm:$0xff] %v2112
        %s2114 = sand.u32 %s109, 1
        %s2115 = scalar_lea.sflag [#allocation3], %s2114
        %s2116 = sand.u32 %s109, 1
        %s2117 = smul.addr %s2116, 8
        %s2118 = scalar_lea.vmem [#allocation2], %s2117
        // Predicated region
        $region33: #{tpu_custom_call.1} parent=31 // pred_check
          %p2119 = pneg %p119
        $region34: #{tpu_custom_call.1} parent=31 // pred_check_branch
          %2121 = sbr.rel (%p2119) target = $region36
        $region35: #{tpu_custom_call.1} parent=31 // pred_region
          %s2123 = ssub.s32 128, 128
          %2124 = vsyncadd %s2115, %s2123
          %s2125 = smul.addr %s21, 2
          %s2126 = sadd.s32 %s22, %s2125
          %s2127 = smul.addr %s2126, 128
          %s2128 = scalar_lea.hbm %s3, %s2127
          %s2130 = sshll.u32 %s2118, 4
          %s2131 = int_to_ptr.vmem [resolvable:$true] %s2130
          %2133 = dma.vmem_to_hbm [thread:$0]  %s2131, 128, %s2128, %s2115
        $region36: #{tpu_custom_call.1} parent=31 // pred_fallthru
          _
      $region32: #{tpu_custom_call.1} parent=5 // pred_fallthru
        _
      %p2134 = scmp.le.s32.totalorder 2, %s12
      // Predicated region
      $region37: #{tpu_custom_call.1} parent=5 // pred_check
        %p2135 = pneg %p2134
      $region38: #{tpu_custom_call.1} parent=5 // pred_check_branch
        %2137 = sbr.rel (%p2135) target = $region40
      $region39: #{tpu_custom_call.1} parent=5 // pred_region
        %s2138 = ssub.s32 %s12, 2
        // Predicated region
        $region41: #{tpu_custom_call.1} parent=39 // pred_check
          %p2139 = pneg %p125
        $region42: #{tpu_custom_call.1} parent=39 // pred_check_branch
          %2141 = sbr.rel (%p2139) target = $region44
        $region43: #{tpu_custom_call.1} parent=39 // pred_region
          %s2142 = sand.u32 %s110, 1
          %s2143 = scalar_lea.sflag [#allocation3], %s2142
          %s2144 = sand.u32 %s110, 1
          %s2145 = smul.addr %s2144, 8
          %s2146 = scalar_lea.vmem [#allocation2], %s2145
          %2147 = dma.done %s2143, 128
        $region44: #{tpu_custom_call.1} parent=39 // pred_fallthru
          _
      $region40: #{tpu_custom_call.1} parent=5 // pred_fallthru
        _
    $region6: #{tpu_custom_call.1} parent=1 // loop_footer
      %s16 = sadd.s32 1, %s12
    $region7: #{tpu_custom_call.1} parent=1 // loop_footer_branch
      %11 = sbr.rel target = $region3
    $region8: #{tpu_custom_call.1} parent=1 // loop_exit
      _
    %2148 = vsyncpa [#allocation3], 1
    %s2149 = scalar_lea.sflag [#allocation3], 1
    %2150 = vsyncpa %s2149, 1

</llo_original>
